<compile_context>
chip_gen: v6e
topology: v6e:2x2x1
jax: 0.10.0
libtpu: 0.0.40
codegen_flags: <defaults>
</compile_context>

<pallas_src>
import jax
import jax.numpy as jnp
import numpy as np
from jax.experimental import pallas as pl
from jax.experimental.pallas import tpu as pltpu

_LANE = 128
_EPS = 1e-5


def _round_up(n, m):
    return (n + m - 1) // m * m


def _make_kernel(L, Cin, Cout, K, Cout_pad):
    pad = K // 2
    inv_cout = 1.0 / Cout

    def kernel(x_ref, e_ref,
               w1_ref, b1_ref, g1_ref, bg1_ref,
               w2_ref, b2_ref, g2_ref, bg2_ref,
               wr_ref, br_ref, o_ref):
        # One grid step == one full sequence of one batch element.
        x = x_ref[...]                                       # (L, Cin) f32

        # ---- hoisted constants: per-tap sequence-edge masks ------------------
        l_idx = jax.lax.broadcasted_iota(jnp.int32, (L, 1), 0)
        tap_mask = []
        for k in range(K):
            d = k - pad
            if d == 0:
                tap_mask.append(None)
            else:
                ok = jnp.logical_and(l_idx + d >= 0, l_idx + d < L)
                tap_mask.append(ok.astype(jnp.float32))

        def conv1d(y_f32, w_ref, b_ref):
            # 'same' K-tap conv over L.  Each tap is one bf16 MXU dot on the
            # unshifted input; the shift is applied to the lane-dense
            # (L, Cout_pad) tap output via an XLU sublane roll, and rows that
            # would read past the sequence edge are zeroed by tap_mask.
            yb = y_f32.astype(jnp.bfloat16)
            acc = jnp.zeros((L, Cout_pad), jnp.float32)
            for k in range(K):
                d = k - pad
                z = jnp.dot(yb, w_ref[k], preferred_element_type=jnp.float32)
                if d == 0:
                    acc = acc + z
                else:
                    acc = acc + pltpu.roll(z, shift=(-d) % L, axis=0) * tap_mask[k]
            return acc + b_ref[...]

        def layernorm(h, g_ref, b_ref):
            # Channel-axis LayerNorm (unbiased=False), single pass over h.
            # Padded channels of h are exactly zero, so sum(h)/Cout and
            # sum(h*h)/Cout are already the statistics over the real channels.
            s1 = jnp.sum(h, axis=-1, keepdims=True)
            s2 = jnp.sum(h * h, axis=-1, keepdims=True)
            mean = s1 * inv_cout
            var = s2 * inv_cout - mean * mean
            return (h - mean) * jax.lax.rsqrt(var + _EPS) * g_ref[...] + b_ref[...]

        def mish(v):
            # x * tanh(softplus(x)) == x * (t - 1) / (t + 1), t = (1 + e^x)^2
            # -> one EUP exp + one approx EUP reciprocal.
            e = jnp.exp(jnp.minimum(v, 20.0))
            t = (1.0 + e) * (1.0 + e)
            return v * (t - 1.0) * pl.reciprocal(t + 1.0, approx=True)

        h = mish(layernorm(conv1d(x, w1_ref, b1_ref), g1_ref, bg1_ref))
        h = h + e_ref[...]                                   # (1, Cout_pad) broadcast
        h = mish(layernorm(conv1d(h, w2_ref, b2_ref), g2_ref, bg2_ref))
        res = jnp.dot(x.astype(jnp.bfloat16), wr_ref[...],
                      preferred_element_type=jnp.float32) + br_ref[...]
        o_ref[...] = (h + res).astype(o_ref.dtype)

    return kernel


def residual_block(x, emb, params):
    """x: (B, L, Cin) f32, emb: (B, E) f32 -> (B, L, Cout) f32 (channels-last)."""
    B, L, Cin = x.shape
    K, _, Cout = params["w1"].shape
    Cout_pad = _round_up(Cout, _LANE)

    # ---- embedding MLP (Mish -> Linear), hoisted out of the kernel ----------
    e = emb * jnp.tanh(jax.nn.softplus(emb))
    e = jnp.dot(e, params["we"]) + params["be"]              # (B, Cout)
    e = e.reshape(B, 1, Cout)

    # ---- pad only the output-channel axis; cast dot weights to bf16 ---------
    def pad_to(a, shape, dtype=None):
        a = jnp.pad(a, [(0, s - d) for d, s in zip(a.shape, shape)])
        return a if dtype is None else a.astype(dtype)

    bf16 = jnp.bfloat16
    xf   = x.astype(jnp.float32)                             # (B, L, Cin), no Cin pad
    ep   = pad_to(e.astype(jnp.float32), (B, 1, Cout_pad))
    w1p  = pad_to(params["w1"], (K, Cin, Cout_pad), bf16)
    w2p  = pad_to(params["w2"], (K, Cout_pad, Cout_pad), bf16)
    wrp  = pad_to(params["wr"], (Cin, Cout_pad), bf16)
    b1p  = pad_to(params["b1"],  (1, Cout_pad))
    g1p  = pad_to(params["g1"],  (1, Cout_pad))
    bg1p = pad_to(params["bg1"], (1, Cout_pad))
    b2p  = pad_to(params["b2"],  (1, Cout_pad))
    g2p  = pad_to(params["g2"],  (1, Cout_pad))
    bg2p = pad_to(params["bg2"], (1, Cout_pad))
    brp  = pad_to(params["br"],  (1, Cout_pad))

    kernel = _make_kernel(L, Cin, Cout, K, Cout_pad)

    const2 = lambda b: (0, 0)          # weights/biases: same block every step -> VMEM-resident
    const3 = lambda b: (0, 0, 0)
    in_specs = [
        pl.BlockSpec((None, L, Cin), lambda b: (b, 0, 0)),          # x       (per-batch tile)
        pl.BlockSpec((None, 1, Cout_pad), lambda b: (b, 0, 0)),     # emb-MLP (per-batch row)
        pl.BlockSpec((K, Cin, Cout_pad), const3),                   # w1      (resident)
        pl.BlockSpec((1, Cout_pad), const2),                        # b1
        pl.BlockSpec((1, Cout_pad), const2),                        # g1
        pl.BlockSpec((1, Cout_pad), const2),                        # bg1
        pl.BlockSpec((K, Cout_pad, Cout_pad), const3),              # w2      (resident)
        pl.BlockSpec((1, Cout_pad), const2),                        # b2
        pl.BlockSpec((1, Cout_pad), const2),                        # g2
        pl.BlockSpec((1, Cout_pad), const2),                        # bg2
        pl.BlockSpec((Cin, Cout_pad), const2),                      # wr      (resident)
        pl.BlockSpec((1, Cout_pad), const2),                        # br
    ]
    out_spec = pl.BlockSpec((None, L, Cout_pad), lambda b: (b, 0, 0))

    flops = 2 * B * L * (K * Cin * Cout + K * Cout * Cout + Cin * Cout)
    bytes_accessed = int(
        xf.size * 4 + ep.size * 4
        + (w1p.size + w2p.size + wrp.size) * 2
        + 7 * Cout_pad * 4
        + B * L * Cout_pad * 4)
    cost = pl.CostEstimate(flops=flops,
                           transcendentals=4 * B * L * Cout_pad,
                           bytes_accessed=bytes_accessed)

    out = pl.pallas_call(
        kernel,
        grid=(B,),
        in_specs=in_specs,
        out_specs=out_spec,
        out_shape=jax.ShapeDtypeStruct((B, L, Cout_pad), jnp.float32),
        compiler_params=pltpu.CompilerParams(
            dimension_semantics=("parallel",),
            vmem_limit_bytes=48 * 1024 * 1024),
        cost_estimate=cost,
    )(xf, ep, w1p, b1p, g1p, bg1p, w2p, b2p, g2p, bg2p, wrp, brp)

    return out[:, :, :Cout].astype(x.dtype)


def ref_forward(x, emb, p):
    """Pure-JAX reference of the same math (channels-last)."""
    def conv1d(y, w, b):
        K = w.shape[0]
        pad = K // 2
        yp = jnp.pad(y, ((0, 0), (pad, pad), (0, 0)))
        return sum(jnp.einsum("blc,cd->bld", yp[:, k:k + y.shape[1]], w[k])
                   for k in range(K)) + b

    def ln(y, g, bb, eps=1e-5):
        mean = y.mean(-1, keepdims=True)
        var = ((y - mean) ** 2).mean(-1, keepdims=True)
        return (y - mean) / jnp.sqrt(var + eps) * g + bb

    def mish(v):
        return v * jnp.tanh(jax.nn.softplus(v))

    h = mish(ln(conv1d(x, p["w1"], p["b1"]), p["g1"], p["bg1"]))
    e = jnp.dot(mish(emb), p["we"]) + p["be"]
    h = h + e[:, None, :]
    h = mish(ln(conv1d(h, p["w2"], p["b2"]), p["g2"], p["bg2"]))
    res = jnp.einsum("blc,cd->bld", x, p["wr"]) + p["br"]
    return h + res


if __name__ == "__main__":
    B, L, Cin, Cout, E, K = 2, 16, 8, 32, 16, 3

    key = jax.random.PRNGKey(0)
    keys = jax.random.split(key, 12)

    def rnd(k, shape, scale=0.1):
        return scale * jax.random.normal(k, shape, dtype=jnp.float32)

    params = dict(
        w1=rnd(keys[0], (K, Cin, Cout)),  b1=rnd(keys[1], (1, Cout)),
        g1=1.0 + rnd(keys[2], (1, Cout)), bg1=rnd(keys[3], (1, Cout)),
        we=rnd(keys[4], (E, Cout)),       be=rnd(keys[5], (1, Cout)),
        w2=rnd(keys[6], (K, Cout, Cout)), b2=rnd(keys[7], (1, Cout)),
        g2=1.0 + rnd(keys[8], (1, Cout)), bg2=rnd(keys[9], (1, Cout)),
        wr=rnd(keys[10], (Cin, Cout)),    br=jnp.zeros((1, Cout), jnp.float32),
    )

    x = jax.random.normal(keys[11], (B, L, Cin), dtype=jnp.float32)
    emb = jax.random.normal(jax.random.PRNGKey(1), (B, E), dtype=jnp.float32)

    out = jax.jit(residual_block)(x, emb, params)
    out = jax.block_until_ready(out)

    ref = ref_forward(x, emb, params)
    # Loose tolerance: bf16 MXU operands (matches default-precision f32 dot
    # behaviour on TPU) and the EUP approx reciprocal inside Mish.
    np.testing.assert_allclose(np.asarray(out), np.asarray(ref), rtol=2e-2, atol=2e-2)

    print("KERNEL_OK")
</pallas_src>

<mosaic_0001>
module attributes {stable_mosaic.version = 11 : i64} {
  func.func @kernel(%arg0: i32, %arg1: memref<1x16x8xf32, #tpu.memory_space<vmem>>, %arg2: memref<1x1x128xf32, #tpu.memory_space<vmem>>, %arg3: memref<3x8x128xbf16, #tpu.memory_space<vmem>>, %arg4: memref<1x128xf32, #tpu.memory_space<vmem>>, %arg5: memref<1x128xf32, #tpu.memory_space<vmem>>, %arg6: memref<1x128xf32, #tpu.memory_space<vmem>>, %arg7: memref<3x128x128xbf16, #tpu.memory_space<vmem>>, %arg8: memref<1x128xf32, #tpu.memory_space<vmem>>, %arg9: memref<1x128xf32, #tpu.memory_space<vmem>>, %arg10: memref<1x128xf32, #tpu.memory_space<vmem>>, %arg11: memref<8x128xbf16, #tpu.memory_space<vmem>>, %arg12: memref<1x128xf32, #tpu.memory_space<vmem>>, %arg13: memref<1x16x128xf32, #tpu.memory_space<vmem>>) attributes {dimension_semantics = [#tpu.dimension_semantics<parallel>], iteration_bounds = array<i64: 2>, scalar_prefetch = 0 : i64, scratch_operands = 0 : i64, tpu.core_type = #tpu.core_type<tc>, window_params = [{transform_indices = @transform_0, window_bounds = array<i64: 1, 16, 8>}, {transform_indices = @transform_1, window_bounds = array<i64: 1, 1, 128>}, {pipeline_mode = #tpu.pipeline_mode<synchronous>, transform_indices = @transform_2, window_bounds = array<i64: 3, 8, 128>}, {pipeline_mode = #tpu.pipeline_mode<synchronous>, transform_indices = @transform_3, window_bounds = array<i64: 1, 128>}, {pipeline_mode = #tpu.pipeline_mode<synchronous>, transform_indices = @transform_4, window_bounds = array<i64: 1, 128>}, {pipeline_mode = #tpu.pipeline_mode<synchronous>, transform_indices = @transform_5, window_bounds = array<i64: 1, 128>}, {pipeline_mode = #tpu.pipeline_mode<synchronous>, transform_indices = @transform_6, window_bounds = array<i64: 3, 128, 128>}, {pipeline_mode = #tpu.pipeline_mode<synchronous>, transform_indices = @transform_7, window_bounds = array<i64: 1, 128>}, {pipeline_mode = #tpu.pipeline_mode<synchronous>, transform_indices = @transform_8, window_bounds = array<i64: 1, 128>}, {pipeline_mode = #tpu.pipeline_mode<synchronous>, transform_indices = @transform_9, window_bounds = array<i64: 1, 128>}, {pipeline_mode = #tpu.pipeline_mode<synchronous>, transform_indices = @transform_10, window_bounds = array<i64: 8, 128>}, {pipeline_mode = #tpu.pipeline_mode<synchronous>, transform_indices = @transform_11, window_bounds = array<i64: 1, 128>}, {transform_indices = @transform_12, window_bounds = array<i64: 1, 16, 128>}]} {
    %c0 = arith.constant 0 : index
    %c0_0 = arith.constant 0 : index
    %c0_1 = arith.constant 0 : index
    %0 = vector.load %arg1[%c0, %c0_0, %c0_1] : memref<1x16x8xf32, #tpu.memory_space<vmem>>, vector<1x16x8xf32>
    %1 = vector.shape_cast %0 : vector<1x16x8xf32> to vector<16x8xf32>
    %2 = tpu.iota {dimensions = array<i32: 0>} : vector<16x1xi32>
    %c-1_i32 = arith.constant -1 : i32
    %3 = vector.broadcast %c-1_i32 : i32 to vector<16x1xi32>
    %4 = arith.addi %2, %3 : vector<16x1xi32>
    %c0_i32 = arith.constant 0 : i32
    %5 = vector.broadcast %c0_i32 : i32 to vector<16x1xi32>
    %6 = arith.cmpi sge, %4, %5 : vector<16x1xi32>
    %c-1_i32_2 = arith.constant -1 : i32
    %7 = vector.broadcast %c-1_i32_2 : i32 to vector<16x1xi32>
    %8 = arith.addi %2, %7 : vector<16x1xi32>
    %c16_i32 = arith.constant 16 : i32
    %9 = vector.broadcast %c16_i32 : i32 to vector<16x1xi32>
    %10 = arith.cmpi slt, %8, %9 : vector<16x1xi32>
    %11 = arith.andi %6, %10 : vector<16x1xi1>
    %12 = arith.extui %11 : vector<16x1xi1> to vector<16x1xi32>
    %13 = arith.sitofp %12 : vector<16x1xi32> to vector<16x1xf32>
    %c1_i32 = arith.constant 1 : i32
    %14 = vector.broadcast %c1_i32 : i32 to vector<16x1xi32>
    %15 = arith.addi %2, %14 : vector<16x1xi32>
    %c0_i32_3 = arith.constant 0 : i32
    %16 = vector.broadcast %c0_i32_3 : i32 to vector<16x1xi32>
    %17 = arith.cmpi sge, %15, %16 : vector<16x1xi32>
    %c1_i32_4 = arith.constant 1 : i32
    %18 = vector.broadcast %c1_i32_4 : i32 to vector<16x1xi32>
    %19 = arith.addi %2, %18 : vector<16x1xi32>
    %c16_i32_5 = arith.constant 16 : i32
    %20 = vector.broadcast %c16_i32_5 : i32 to vector<16x1xi32>
    %21 = arith.cmpi slt, %19, %20 : vector<16x1xi32>
    %22 = arith.andi %17, %21 : vector<16x1xi1>
    %23 = arith.extui %22 : vector<16x1xi1> to vector<16x1xi32>
    %24 = arith.sitofp %23 : vector<16x1xi32> to vector<16x1xf32>
    %25 = arith.truncf %1 : vector<16x8xf32> to vector<16x8xbf16>
    %cst = arith.constant 0.000000e+00 : f32
    %26 = vector.broadcast %cst : f32 to vector<16x128xf32>
    %c0_6 = arith.constant 0 : index
    %c0_7 = arith.constant 0 : index
    %c0_8 = arith.constant 0 : index
    %27 = vector.load %arg3[%c0_6, %c0_7, %c0_8] : memref<3x8x128xbf16, #tpu.memory_space<vmem>>, vector<1x8x128xbf16>
    %28 = vector.shape_cast %27 : vector<1x8x128xbf16> to vector<8x128xbf16>
    %cst_9 = arith.constant dense<0.000000e+00> : vector<16x128xf32>
    %29 = tpu.matmul %25, %28, %cst_9 {dimension_numbers = #tpu.dot_dimension_numbers<[1], [0], [0], [1], [0, 0, 1, 1], [], []>} : vector<16x8xbf16>, vector<8x128xbf16>, vector<16x128xf32> -> vector<16x128xf32>
    %c1_i32_10 = arith.constant 1 : i32
    %30 = tpu.dynamic_rotate %29 by %c1_i32_10 dim 0 : vector<16x128xf32>, i32 -> vector<16x128xf32>
    %31 = vector.broadcast %13 : vector<16x1xf32> to vector<16x128xf32>
    %32 = arith.mulf %30, %31 : vector<16x128xf32>
    %33 = arith.addf %26, %32 : vector<16x128xf32>
    %c1 = arith.constant 1 : index
    %c0_11 = arith.constant 0 : index
    %c0_12 = arith.constant 0 : index
    %34 = vector.load %arg3[%c1, %c0_11, %c0_12] : memref<3x8x128xbf16, #tpu.memory_space<vmem>>, vector<1x8x128xbf16>
    %35 = vector.shape_cast %34 : vector<1x8x128xbf16> to vector<8x128xbf16>
    %cst_13 = arith.constant dense<0.000000e+00> : vector<16x128xf32>
    %36 = tpu.matmul %25, %35, %cst_13 {dimension_numbers = #tpu.dot_dimension_numbers<[1], [0], [0], [1], [0, 0, 1, 1], [], []>} : vector<16x8xbf16>, vector<8x128xbf16>, vector<16x128xf32> -> vector<16x128xf32>
    %37 = arith.addf %33, %36 : vector<16x128xf32>
    %c2 = arith.constant 2 : index
    %c0_14 = arith.constant 0 : index
    %c0_15 = arith.constant 0 : index
    %38 = vector.load %arg3[%c2, %c0_14, %c0_15] : memref<3x8x128xbf16, #tpu.memory_space<vmem>>, vector<1x8x128xbf16>
    %39 = vector.shape_cast %38 : vector<1x8x128xbf16> to vector<8x128xbf16>
    %cst_16 = arith.constant dense<0.000000e+00> : vector<16x128xf32>
    %40 = tpu.matmul %25, %39, %cst_16 {dimension_numbers = #tpu.dot_dimension_numbers<[1], [0], [0], [1], [0, 0, 1, 1], [], []>} : vector<16x8xbf16>, vector<8x128xbf16>, vector<16x128xf32> -> vector<16x128xf32>
    %c15_i32 = arith.constant 15 : i32
    %41 = tpu.dynamic_rotate %40 by %c15_i32 dim 0 : vector<16x128xf32>, i32 -> vector<16x128xf32>
    %42 = vector.broadcast %24 : vector<16x1xf32> to vector<16x128xf32>
    %43 = arith.mulf %41, %42 : vector<16x128xf32>
    %44 = arith.addf %37, %43 : vector<16x128xf32>
    %c0_17 = arith.constant 0 : index
    %c0_18 = arith.constant 0 : index
    %45 = vector.load %arg4[%c0_17, %c0_18] : memref<1x128xf32, #tpu.memory_space<vmem>>, vector<1x128xf32>
    %46 = vector.broadcast %45 : vector<1x128xf32> to vector<16x128xf32>
    %47 = arith.addf %44, %46 : vector<16x128xf32>
    %cst_19 = arith.constant dense<0.000000e+00> : vector<16xf32>
    %48 = vector.multi_reduction <add>, %47, %cst_19 [1] : vector<16x128xf32> to vector<16xf32>
    %49 = vector.shape_cast %48 : vector<16xf32> to vector<16x1xf32>
    %50 = arith.mulf %47, %47 : vector<16x128xf32>
    %cst_20 = arith.constant dense<0.000000e+00> : vector<16xf32>
    %51 = vector.multi_reduction <add>, %50, %cst_20 [1] : vector<16x128xf32> to vector<16xf32>
    %52 = vector.shape_cast %51 : vector<16xf32> to vector<16x1xf32>
    %cst_21 = arith.constant 3.125000e-02 : f32
    %53 = vector.broadcast %cst_21 : f32 to vector<16x1xf32>
    %54 = arith.mulf %49, %53 : vector<16x1xf32>
    %cst_22 = arith.constant 3.125000e-02 : f32
    %55 = vector.broadcast %cst_22 : f32 to vector<16x1xf32>
    %56 = arith.mulf %52, %55 : vector<16x1xf32>
    %57 = arith.mulf %54, %54 : vector<16x1xf32>
    %58 = arith.subf %56, %57 : vector<16x1xf32>
    %59 = vector.broadcast %54 : vector<16x1xf32> to vector<16x128xf32>
    %60 = arith.subf %47, %59 : vector<16x128xf32>
    %cst_23 = arith.constant 9.99999974E-6 : f32
    %61 = vector.broadcast %cst_23 : f32 to vector<16x1xf32>
    %62 = arith.addf %58, %61 : vector<16x1xf32>
    %63 = math.rsqrt %62 : vector<16x1xf32>
    %64 = vector.broadcast %63 : vector<16x1xf32> to vector<16x128xf32>
    %65 = arith.mulf %60, %64 : vector<16x128xf32>
    %c0_24 = arith.constant 0 : index
    %c0_25 = arith.constant 0 : index
    %66 = vector.load %arg5[%c0_24, %c0_25] : memref<1x128xf32, #tpu.memory_space<vmem>>, vector<1x128xf32>
    %67 = vector.broadcast %66 : vector<1x128xf32> to vector<16x128xf32>
    %68 = arith.mulf %65, %67 : vector<16x128xf32>
    %c0_26 = arith.constant 0 : index
    %c0_27 = arith.constant 0 : index
    %69 = vector.load %arg6[%c0_26, %c0_27] : memref<1x128xf32, #tpu.memory_space<vmem>>, vector<1x128xf32>
    %70 = vector.broadcast %69 : vector<1x128xf32> to vector<16x128xf32>
    %71 = arith.addf %68, %70 : vector<16x128xf32>
    %cst_28 = arith.constant 2.000000e+01 : f32
    %72 = vector.broadcast %cst_28 : f32 to vector<16x128xf32>
    %73 = arith.minimumf %71, %72 : vector<16x128xf32>
    %74 = math.exp %73 : vector<16x128xf32>
    %cst_29 = arith.constant 1.000000e+00 : f32
    %75 = vector.broadcast %cst_29 : f32 to vector<16x128xf32>
    %76 = arith.addf %75, %74 : vector<16x128xf32>
    %cst_30 = arith.constant 1.000000e+00 : f32
    %77 = vector.broadcast %cst_30 : f32 to vector<16x128xf32>
    %78 = arith.addf %77, %74 : vector<16x128xf32>
    %79 = arith.mulf %76, %78 : vector<16x128xf32>
    %cst_31 = arith.constant 1.000000e+00 : f32
    %80 = vector.broadcast %cst_31 : f32 to vector<16x128xf32>
    %81 = arith.subf %79, %80 : vector<16x128xf32>
    %82 = arith.mulf %71, %81 : vector<16x128xf32>
    %cst_32 = arith.constant 1.000000e+00 : f32
    %83 = vector.broadcast %cst_32 : f32 to vector<16x128xf32>
    %84 = arith.addf %79, %83 : vector<16x128xf32>
    %85 = tpu.reciprocal %84 {approx = true} : vector<16x128xf32> -> vector<16x128xf32>
    %86 = arith.mulf %82, %85 : vector<16x128xf32>
    %c0_33 = arith.constant 0 : index
    %c0_34 = arith.constant 0 : index
    %c0_35 = arith.constant 0 : index
    %87 = vector.load %arg2[%c0_33, %c0_34, %c0_35] : memref<1x1x128xf32, #tpu.memory_space<vmem>>, vector<1x1x128xf32>
    %88 = vector.shape_cast %87 : vector<1x1x128xf32> to vector<1x128xf32>
    %89 = vector.broadcast %88 : vector<1x128xf32> to vector<16x128xf32>
    %90 = arith.addf %86, %89 : vector<16x128xf32>
    %91 = arith.truncf %90 : vector<16x128xf32> to vector<16x128xbf16>
    %cst_36 = arith.constant 0.000000e+00 : f32
    %92 = vector.broadcast %cst_36 : f32 to vector<16x128xf32>
    %c0_37 = arith.constant 0 : index
    %c0_38 = arith.constant 0 : index
    %c0_39 = arith.constant 0 : index
    %93 = vector.load %arg7[%c0_37, %c0_38, %c0_39] : memref<3x128x128xbf16, #tpu.memory_space<vmem>>, vector<1x128x128xbf16>
    %94 = vector.shape_cast %93 : vector<1x128x128xbf16> to vector<128x128xbf16>
    %cst_40 = arith.constant dense<0.000000e+00> : vector<16x128xf32>
    %95 = tpu.matmul %91, %94, %cst_40 {dimension_numbers = #tpu.dot_dimension_numbers<[1], [0], [0], [1], [0, 0, 1, 1], [], []>} : vector<16x128xbf16>, vector<128x128xbf16>, vector<16x128xf32> -> vector<16x128xf32>
    %c1_i32_41 = arith.constant 1 : i32
    %96 = tpu.dynamic_rotate %95 by %c1_i32_41 dim 0 : vector<16x128xf32>, i32 -> vector<16x128xf32>
    %97 = vector.broadcast %13 : vector<16x1xf32> to vector<16x128xf32>
    %98 = arith.mulf %96, %97 : vector<16x128xf32>
    %99 = arith.addf %92, %98 : vector<16x128xf32>
    %c1_42 = arith.constant 1 : index
    %c0_43 = arith.constant 0 : index
    %c0_44 = arith.constant 0 : index
    %100 = vector.load %arg7[%c1_42, %c0_43, %c0_44] : memref<3x128x128xbf16, #tpu.memory_space<vmem>>, vector<1x128x128xbf16>
    %101 = vector.shape_cast %100 : vector<1x128x128xbf16> to vector<128x128xbf16>
    %cst_45 = arith.constant dense<0.000000e+00> : vector<16x128xf32>
    %102 = tpu.matmul %91, %101, %cst_45 {dimension_numbers = #tpu.dot_dimension_numbers<[1], [0], [0], [1], [0, 0, 1, 1], [], []>} : vector<16x128xbf16>, vector<128x128xbf16>, vector<16x128xf32> -> vector<16x128xf32>
    %103 = arith.addf %99, %102 : vector<16x128xf32>
    %c2_46 = arith.constant 2 : index
    %c0_47 = arith.constant 0 : index
    %c0_48 = arith.constant 0 : index
    %104 = vector.load %arg7[%c2_46, %c0_47, %c0_48] : memref<3x128x128xbf16, #tpu.memory_space<vmem>>, vector<1x128x128xbf16>
    %105 = vector.shape_cast %104 : vector<1x128x128xbf16> to vector<128x128xbf16>
    %cst_49 = arith.constant dense<0.000000e+00> : vector<16x128xf32>
    %106 = tpu.matmul %91, %105, %cst_49 {dimension_numbers = #tpu.dot_dimension_numbers<[1], [0], [0], [1], [0, 0, 1, 1], [], []>} : vector<16x128xbf16>, vector<128x128xbf16>, vector<16x128xf32> -> vector<16x128xf32>
    %c15_i32_50 = arith.constant 15 : i32
    %107 = tpu.dynamic_rotate %106 by %c15_i32_50 dim 0 : vector<16x128xf32>, i32 -> vector<16x128xf32>
    %108 = vector.broadcast %24 : vector<16x1xf32> to vector<16x128xf32>
    %109 = arith.mulf %107, %108 : vector<16x128xf32>
    %110 = arith.addf %103, %109 : vector<16x128xf32>
    %c0_51 = arith.constant 0 : index
    %c0_52 = arith.constant 0 : index
    %111 = vector.load %arg8[%c0_51, %c0_52] : memref<1x128xf32, #tpu.memory_space<vmem>>, vector<1x128xf32>
    %112 = vector.broadcast %111 : vector<1x128xf32> to vector<16x128xf32>
    %113 = arith.addf %110, %112 : vector<16x128xf32>
    %cst_53 = arith.constant dense<0.000000e+00> : vector<16xf32>
    %114 = vector.multi_reduction <add>, %113, %cst_53 [1] : vector<16x128xf32> to vector<16xf32>
    %115 = vector.shape_cast %114 : vector<16xf32> to vector<16x1xf32>
    %116 = arith.mulf %113, %113 : vector<16x128xf32>
    %cst_54 = arith.constant dense<0.000000e+00> : vector<16xf32>
    %117 = vector.multi_reduction <add>, %116, %cst_54 [1] : vector<16x128xf32> to vector<16xf32>
    %118 = vector.shape_cast %117 : vector<16xf32> to vector<16x1xf32>
    %cst_55 = arith.constant 3.125000e-02 : f32
    %119 = vector.broadcast %cst_55 : f32 to vector<16x1xf32>
    %120 = arith.mulf %115, %119 : vector<16x1xf32>
    %cst_56 = arith.constant 3.125000e-02 : f32
    %121 = vector.broadcast %cst_56 : f32 to vector<16x1xf32>
    %122 = arith.mulf %118, %121 : vector<16x1xf32>
    %123 = arith.mulf %120, %120 : vector<16x1xf32>
    %124 = arith.subf %122, %123 : vector<16x1xf32>
    %125 = vector.broadcast %120 : vector<16x1xf32> to vector<16x128xf32>
    %126 = arith.subf %113, %125 : vector<16x128xf32>
    %cst_57 = arith.constant 9.99999974E-6 : f32
    %127 = vector.broadcast %cst_57 : f32 to vector<16x1xf32>
    %128 = arith.addf %124, %127 : vector<16x1xf32>
    %129 = math.rsqrt %128 : vector<16x1xf32>
    %130 = vector.broadcast %129 : vector<16x1xf32> to vector<16x128xf32>
    %131 = arith.mulf %126, %130 : vector<16x128xf32>
    %c0_58 = arith.constant 0 : index
    %c0_59 = arith.constant 0 : index
    %132 = vector.load %arg9[%c0_58, %c0_59] : memref<1x128xf32, #tpu.memory_space<vmem>>, vector<1x128xf32>
    %133 = vector.broadcast %132 : vector<1x128xf32> to vector<16x128xf32>
    %134 = arith.mulf %131, %133 : vector<16x128xf32>
    %c0_60 = arith.constant 0 : index
    %c0_61 = arith.constant 0 : index
    %135 = vector.load %arg10[%c0_60, %c0_61] : memref<1x128xf32, #tpu.memory_space<vmem>>, vector<1x128xf32>
    %136 = vector.broadcast %135 : vector<1x128xf32> to vector<16x128xf32>
    %137 = arith.addf %134, %136 : vector<16x128xf32>
    %cst_62 = arith.constant 2.000000e+01 : f32
    %138 = vector.broadcast %cst_62 : f32 to vector<16x128xf32>
    %139 = arith.minimumf %137, %138 : vector<16x128xf32>
    %140 = math.exp %139 : vector<16x128xf32>
    %cst_63 = arith.constant 1.000000e+00 : f32
    %141 = vector.broadcast %cst_63 : f32 to vector<16x128xf32>
    %142 = arith.addf %141, %140 : vector<16x128xf32>
    %cst_64 = arith.constant 1.000000e+00 : f32
    %143 = vector.broadcast %cst_64 : f32 to vector<16x128xf32>
    %144 = arith.addf %143, %140 : vector<16x128xf32>
    %145 = arith.mulf %142, %144 : vector<16x128xf32>
    %cst_65 = arith.constant 1.000000e+00 : f32
    %146 = vector.broadcast %cst_65 : f32 to vector<16x128xf32>
    %147 = arith.subf %145, %146 : vector<16x128xf32>
    %148 = arith.mulf %137, %147 : vector<16x128xf32>
    %cst_66 = arith.constant 1.000000e+00 : f32
    %149 = vector.broadcast %cst_66 : f32 to vector<16x128xf32>
    %150 = arith.addf %145, %149 : vector<16x128xf32>
    %151 = tpu.reciprocal %150 {approx = true} : vector<16x128xf32> -> vector<16x128xf32>
    %152 = arith.mulf %148, %151 : vector<16x128xf32>
    %153 = arith.truncf %1 : vector<16x8xf32> to vector<16x8xbf16>
    %c0_67 = arith.constant 0 : index
    %c0_68 = arith.constant 0 : index
    %154 = vector.load %arg11[%c0_67, %c0_68] : memref<8x128xbf16, #tpu.memory_space<vmem>>, vector<8x128xbf16>
    %cst_69 = arith.constant dense<0.000000e+00> : vector<16x128xf32>
    %155 = tpu.matmul %153, %154, %cst_69 {dimension_numbers = #tpu.dot_dimension_numbers<[1], [0], [0], [1], [0, 0, 1, 1], [], []>} : vector<16x8xbf16>, vector<8x128xbf16>, vector<16x128xf32> -> vector<16x128xf32>
    %c0_70 = arith.constant 0 : index
    %c0_71 = arith.constant 0 : index
    %156 = vector.load %arg12[%c0_70, %c0_71] : memref<1x128xf32, #tpu.memory_space<vmem>>, vector<1x128xf32>
    %157 = vector.broadcast %156 : vector<1x128xf32> to vector<16x128xf32>
    %158 = arith.addf %155, %157 : vector<16x128xf32>
    %159 = arith.addf %152, %158 : vector<16x128xf32>
    %c0_72 = arith.constant 0 : index
    %c0_73 = arith.constant 0 : index
    %c0_74 = arith.constant 0 : index
    %160 = vector.load %arg13[%c0_72, %c0_73, %c0_74] : memref<1x16x128xf32, #tpu.memory_space<vmem>>, vector<1x16x128xf32>
    %161 = vector.shape_cast %160 : vector<1x16x128xf32> to vector<16x128xf32>
    %162 = vector.shape_cast %159 : vector<16x128xf32> to vector<1x16x128xf32>
    tpu.vector_store %arg13[%c0_72, %c0_73, %c0_74], %162 {strides = array<i32>} : memref<1x16x128xf32, #tpu.memory_space<vmem>>, vector<1x16x128xf32>,
    return
  }
  func.func @transform_0(%arg0: i32) -> (i32, i32, i32) {
    %c0_i32 = arith.constant 0 : i32
    %c0_i32_0 = arith.constant 0 : i32
    %c0_i32_1 = arith.constant 0 : i32
    return %arg0, %c0_i32, %c0_i32_0 : i32, i32, i32
  }
  func.func @transform_1(%arg0: i32) -> (i32, i32, i32) {
    %c0_i32 = arith.constant 0 : i32
    %c0_i32_0 = arith.constant 0 : i32
    %c0_i32_1 = arith.constant 0 : i32
    return %arg0, %c0_i32, %c0_i32_0 : i32, i32, i32
  }
  func.func @transform_2(%arg0: i32) -> (i32, i32, i32) {
    %c0_i32 = arith.constant 0 : i32
    %c0_i32_0 = arith.constant 0 : i32
    %c0_i32_1 = arith.constant 0 : i32
    %c0_i32_2 = arith.constant 0 : i32
    return %c0_i32, %c0_i32_0, %c0_i32_1 : i32, i32, i32
  }
  func.func @transform_3(%arg0: i32) -> (i32, i32) {
    %c0_i32 = arith.constant 0 : i32
    %c0_i32_0 = arith.constant 0 : i32
    %c0_i32_1 = arith.constant 0 : i32
    return %c0_i32, %c0_i32_0 : i32, i32
  }
  func.func @transform_4(%arg0: i32) -> (i32, i32) {
    %c0_i32 = arith.constant 0 : i32
    %c0_i32_0 = arith.constant 0 : i32
    %c0_i32_1 = arith.constant 0 : i32
    return %c0_i32, %c0_i32_0 : i32, i32
  }
  func.func @transform_5(%arg0: i32) -> (i32, i32) {
    %c0_i32 = arith.constant 0 : i32
    %c0_i32_0 = arith.constant 0 : i32
    %c0_i32_1 = arith.constant 0 : i32
    return %c0_i32, %c0_i32_0 : i32, i32
  }
  func.func @transform_6(%arg0: i32) -> (i32, i32, i32) {
    %c0_i32 = arith.constant 0 : i32
    %c0_i32_0 = arith.constant 0 : i32
    %c0_i32_1 = arith.constant 0 : i32
    %c0_i32_2 = arith.constant 0 : i32
    return %c0_i32, %c0_i32_0, %c0_i32_1 : i32, i32, i32
  }
  func.func @transform_7(%arg0: i32) -> (i32, i32) {
    %c0_i32 = arith.constant 0 : i32
    %c0_i32_0 = arith.constant 0 : i32
    %c0_i32_1 = arith.constant 0 : i32
    return %c0_i32, %c0_i32_0 : i32, i32
  }
  func.func @transform_8(%arg0: i32) -> (i32, i32) {
    %c0_i32 = arith.constant 0 : i32
    %c0_i32_0 = arith.constant 0 : i32
    %c0_i32_1 = arith.constant 0 : i32
    return %c0_i32, %c0_i32_0 : i32, i32
  }
  func.func @transform_9(%arg0: i32) -> (i32, i32) {
    %c0_i32 = arith.constant 0 : i32
    %c0_i32_0 = arith.constant 0 : i32
    %c0_i32_1 = arith.constant 0 : i32
    return %c0_i32, %c0_i32_0 : i32, i32
  }
  func.func @transform_10(%arg0: i32) -> (i32, i32) {
    %c0_i32 = arith.constant 0 : i32
    %c0_i32_0 = arith.constant 0 : i32
    %c0_i32_1 = arith.constant 0 : i32
    return %c0_i32, %c0_i32_0 : i32, i32
  }
  func.func @transform_11(%arg0: i32) -> (i32, i32) {
    %c0_i32 = arith.constant 0 : i32
    %c0_i32_0 = arith.constant 0 : i32
    %c0_i32_1 = arith.constant 0 : i32
    return %c0_i32, %c0_i32_0 : i32, i32
  }
  func.func @transform_12(%arg0: i32) -> (i32, i32, i32) {
    %c0_i32 = arith.constant 0 : i32
    %c0_i32_0 = arith.constant 0 : i32
    %c0_i32_1 = arith.constant 0 : i32
    return %arg0, %c0_i32, %c0_i32_0 : i32, i32, i32
  }
}

</mosaic_0001>

<llo_original>
// kernel: residual_block.1
$region0: #{residual_block.1}
  #allocation0 [shape = 'u32[]', space=smem, size = 0x4, offset = 0x4, fixed_abs, tag = 'smem constant byte address 0x4 - core index']
  #allocation1 [shape = 'u32[144,128]{1,0:T(1,128)}', space=vmem, size = 0x12000, scoped, tag = 'internal scratch']
  %s0 = inlined_call_operand.vmem [shape: f32[2,16,8], index: 0, kind: input, shape index: {}]
  %s1 = inlined_call_operand.vmem [shape: f32[2,1,128], index: 1, kind: input, shape index: {}]
  %s2 = inlined_call_operand.vmem [shape: bf16[3,8,128], index: 2, kind: input, shape index: {}]
  %s3 = inlined_call_operand.vmem [shape: f32[1,128], index: 3, kind: input, shape index: {}]
  %s4 = inlined_call_operand.vmem [shape: f32[1,128], index: 4, kind: input, shape index: {}]
  %s5 = inlined_call_operand.vmem [shape: f32[1,128], index: 5, kind: input, shape index: {}]
  %s6 = inlined_call_operand.vmem [shape: bf16[3,128,128], index: 6, kind: input, shape index: {}]
  %s7 = inlined_call_operand.vmem [shape: f32[1,128], index: 7, kind: input, shape index: {}]
  %s8 = inlined_call_operand.vmem [shape: f32[1,128], index: 8, kind: input, shape index: {}]
  %s9 = inlined_call_operand.vmem [shape: f32[1,128], index: 9, kind: input, shape index: {}]
  %s10 = inlined_call_operand.vmem [shape: bf16[8,128], index: 10, kind: input, shape index: {}]
  %s11 = inlined_call_operand.vmem [shape: f32[1,128], index: 11, kind: input, shape index: {}]
  %s12 = inlined_call_operand.hbm [shape: f32[2,16,128], index: 12, kind: output, shape index: {}]
  %s13 = sld [smem:[#allocation0]]
  $region81: #{residual_block.1} parent=0
    _
  %s15 = ssub.s32 1, %s13
  %s16 = scalar_select 0, %s15, %s13
  $region1: #{residual_block.1} parent=0
    #allocation2 [shape = 'u8[16384]{0}', space=vmem, size = 0x4000, scoped, tag = 'output window, operand 0']
    #allocation3 [shape = 's32[2]{0}', space=sflag, size = 0x8, scoped, tag = 'scoped memory for residual_block.1']
    %17 = vsyncpa [#allocation3], 0
    %s18 = scalar_lea.sflag [#allocation3], 1
    %19 = vsyncpa %s18, 0
    loop: start=0, step=1, limit=4
    $region2: #{residual_block.1} parent=1 // loop_pre_header
      _
    $region3: #{residual_block.1} parent=1 // loop_header
      %s21 = sphi 0, %s25
      %p22 = scmp.ge.s32.totalorder %s21, 4
      %s31 = sphi 0, %s33
      %s34 = sphi 0, %s31
      %s35 = sphi 0, %s34
      %s51 = sphi 0, %s35
      %s57 = sphi 0, %s59
      %s60 = sphi 0, %s57
      %s61 = sphi 0, %s60
      %s77 = sphi 0, %s61
      %s81 = sphi 0, %s81
      %s83 = sphi 0, %s81
      %s84 = sphi 0, %s83
      %s98 = sphi 0, %s84
      %s102 = sphi 0, %s102
      %s104 = sphi 0, %s102
      %s105 = sphi 0, %s104
      %s119 = sphi 0, %s105
      %s123 = sphi 0, %s123
      %s125 = sphi 0, %s123
      %s126 = sphi 0, %s125
      %s140 = sphi 0, %s126
      %s144 = sphi 0, %s144
      %s146 = sphi 0, %s144
      %s147 = sphi 0, %s146
      %s161 = sphi 0, %s147
      %s165 = sphi 0, %s165
      %s167 = sphi 0, %s165
      %s168 = sphi 0, %s167
      %s182 = sphi 0, %s168
      %s186 = sphi 0, %s186
      %s188 = sphi 0, %s186
      %s189 = sphi 0, %s188
      %s203 = sphi 0, %s189
      %s207 = sphi 0, %s207
      %s209 = sphi 0, %s207
      %s210 = sphi 0, %s209
      %s224 = sphi 0, %s210
      %s228 = sphi 0, %s228
      %s230 = sphi 0, %s228
      %s231 = sphi 0, %s230
      %s245 = sphi 0, %s231
      %s249 = sphi 0, %s249
      %s251 = sphi 0, %s249
      %s252 = sphi 0, %s251
      %s266 = sphi 0, %s252
      %s270 = sphi 0, %s270
      %s272 = sphi 0, %s270
      %s273 = sphi 0, %s272
      %s287 = sphi 0, %s273
      %s293 = sphi 0, %s295
      %s296 = sphi 0, %s293
      %s297 = sphi 0, %s296
      %s313 = sphi 0, %s297
    $region4: #{residual_block.1} parent=1 // loop_header_branch
      %24 = sbr.rel (%p22) target = $region8
    $region5: #{residual_block.1} parent=1 // loop_body
      %s26 = ssub.s32 %s21, 1
      %s27 = ssub.s32 %s21, 2
      %s28 = sadd.s32 %s21, 1
      %s29 = ssub.s32 %s21, %s28
      %p30 = scmp.eq.s32.totalorder %s29, 0
      %s32 = sadd.s32 %s31, 1
      %s33 = scalar_select %p30, %s31, %s32
      %p36 = pneg %p30
      %p37 = scmp.eq.s32.totalorder %s21, 1
      %p38 = por %p36, %p37
      %p39 = scmp.ne.s32.totalorder %s31, %s34
      %p40 = scmp.eq.s32.totalorder %s21, 0
      %p41 = por %p39, %p40
      %p42 = scmp.ne.s32.totalorder %s31, %s34
      %p43 = scmp.eq.s32.totalorder %s26, 1
      %p44 = por %p42, %p43
      %p45 = scmp.ne.s32.totalorder %s34, %s35
      %p46 = scmp.eq.s32.totalorder %s26, 0
      %p47 = por %p45, %p46
      %p48 = scmp.ne.s32.totalorder %s34, %s35
      %p49 = scmp.eq.s32.totalorder %s27, 1
      %p50 = por %p48, %p49
      %p52 = scmp.ne.s32.totalorder %s35, %s51
      %p53 = scmp.eq.s32.totalorder %s27, 0
      %p54 = por %p52, %p53
      %s55 = ssub.s32 %s21, %s28
      %p56 = scmp.eq.s32.totalorder %s55, 0
      %s58 = sadd.s32 %s57, 1
      %s59 = scalar_select %p56, %s57, %s58
      %p62 = pneg %p56
      %p63 = scmp.eq.s32.totalorder %s21, 1
      %p64 = por %p62, %p63
      %p65 = scmp.ne.s32.totalorder %s57, %s60
      %p66 = scmp.eq.s32.totalorder %s21, 0
      %p67 = por %p65, %p66
      %p68 = scmp.ne.s32.totalorder %s57, %s60
      %p69 = scmp.eq.s32.totalorder %s26, 1
      %p70 = por %p68, %p69
      %p71 = scmp.ne.s32.totalorder %s60, %s61
      %p72 = scmp.eq.s32.totalorder %s26, 0
      %p73 = por %p71, %p72
      %p74 = scmp.ne.s32.totalorder %s60, %s61
      %p75 = scmp.eq.s32.totalorder %s27, 1
      %p76 = por %p74, %p75
      %p78 = scmp.ne.s32.totalorder %s61, %s77
      %p79 = scmp.eq.s32.totalorder %s27, 0
      %p80 = por %p78, %p79
      %s82 = sadd.s32 %s81, 1
      %p85 = scmp.eq.s32.totalorder %s21, 1
      %p86 = scmp.ne.s32.totalorder %s81, %s83
      %p87 = scmp.eq.s32.totalorder %s21, 0
      %p88 = por %p86, %p87
      %p89 = scmp.ne.s32.totalorder %s81, %s83
      %p90 = scmp.eq.s32.totalorder %s26, 1
      %p91 = por %p89, %p90
      %p92 = scmp.ne.s32.totalorder %s83, %s84
      %p93 = scmp.eq.s32.totalorder %s26, 0
      %p94 = por %p92, %p93
      %p95 = scmp.ne.s32.totalorder %s83, %s84
      %p96 = scmp.eq.s32.totalorder %s27, 1
      %p97 = por %p95, %p96
      %p99 = scmp.ne.s32.totalorder %s84, %s98
      %p100 = scmp.eq.s32.totalorder %s27, 0
      %p101 = por %p99, %p100
      %s103 = sadd.s32 %s102, 1
      %p106 = scmp.eq.s32.totalorder %s21, 1
      %p107 = scmp.ne.s32.totalorder %s102, %s104
      %p108 = scmp.eq.s32.totalorder %s21, 0
      %p109 = por %p107, %p108
      %p110 = scmp.ne.s32.totalorder %s102, %s104
      %p111 = scmp.eq.s32.totalorder %s26, 1
      %p112 = por %p110, %p111
      %p113 = scmp.ne.s32.totalorder %s104, %s105
      %p114 = scmp.eq.s32.totalorder %s26, 0
      %p115 = por %p113, %p114
      %p116 = scmp.ne.s32.totalorder %s104, %s105
      %p117 = scmp.eq.s32.totalorder %s27, 1
      %p118 = por %p116, %p117
      %p120 = scmp.ne.s32.totalorder %s105, %s119
      %p121 = scmp.eq.s32.totalorder %s27, 0
      %p122 = por %p120, %p121
      %s124 = sadd.s32 %s123, 1
      %p127 = scmp.eq.s32.totalorder %s21, 1
      %p128 = scmp.ne.s32.totalorder %s123, %s125
      %p129 = scmp.eq.s32.totalorder %s21, 0
      %p130 = por %p128, %p129
      %p131 = scmp.ne.s32.totalorder %s123, %s125
      %p132 = scmp.eq.s32.totalorder %s26, 1
      %p133 = por %p131, %p132
      %p134 = scmp.ne.s32.totalorder %s125, %s126
      %p135 = scmp.eq.s32.totalorder %s26, 0
      %p136 = por %p134, %p135
      %p137 = scmp.ne.s32.totalorder %s125, %s126
      %p138 = scmp.eq.s32.totalorder %s27, 1
      %p139 = por %p137, %p138
      %p141 = scmp.ne.s32.totalorder %s126, %s140
      %p142 = scmp.eq.s32.totalorder %s27, 0
      %p143 = por %p141, %p142
      %s145 = sadd.s32 %s144, 1
      %p148 = scmp.eq.s32.totalorder %s21, 1
      %p149 = scmp.ne.s32.totalorder %s144, %s146
      %p150 = scmp.eq.s32.totalorder %s21, 0
      %p151 = por %p149, %p150
      %p152 = scmp.ne.s32.totalorder %s144, %s146
      %p153 = scmp.eq.s32.totalorder %s26, 1
      %p154 = por %p152, %p153
      %p155 = scmp.ne.s32.totalorder %s146, %s147
      %p156 = scmp.eq.s32.totalorder %s26, 0
      %p157 = por %p155, %p156
      %p158 = scmp.ne.s32.totalorder %s146, %s147
      %p159 = scmp.eq.s32.totalorder %s27, 1
      %p160 = por %p158, %p159
      %p162 = scmp.ne.s32.totalorder %s147, %s161
      %p163 = scmp.eq.s32.totalorder %s27, 0
      %p164 = por %p162, %p163
      %s166 = sadd.s32 %s165, 1
      %p169 = scmp.eq.s32.totalorder %s21, 1
      %p170 = scmp.ne.s32.totalorder %s165, %s167
      %p171 = scmp.eq.s32.totalorder %s21, 0
      %p172 = por %p170, %p171
      %p173 = scmp.ne.s32.totalorder %s165, %s167
      %p174 = scmp.eq.s32.totalorder %s26, 1
      %p175 = por %p173, %p174
      %p176 = scmp.ne.s32.totalorder %s167, %s168
      %p177 = scmp.eq.s32.totalorder %s26, 0
      %p178 = por %p176, %p177
      %p179 = scmp.ne.s32.totalorder %s167, %s168
      %p180 = scmp.eq.s32.totalorder %s27, 1
      %p181 = por %p179, %p180
      %p183 = scmp.ne.s32.totalorder %s168, %s182
      %p184 = scmp.eq.s32.totalorder %s27, 0
      %p185 = por %p183, %p184
      %s187 = sadd.s32 %s186, 1
      %p190 = scmp.eq.s32.totalorder %s21, 1
      %p191 = scmp.ne.s32.totalorder %s186, %s188
      %p192 = scmp.eq.s32.totalorder %s21, 0
      %p193 = por %p191, %p192
      %p194 = scmp.ne.s32.totalorder %s186, %s188
      %p195 = scmp.eq.s32.totalorder %s26, 1
      %p196 = por %p194, %p195
      %p197 = scmp.ne.s32.totalorder %s188, %s189
      %p198 = scmp.eq.s32.totalorder %s26, 0
      %p199 = por %p197, %p198
      %p200 = scmp.ne.s32.totalorder %s188, %s189
      %p201 = scmp.eq.s32.totalorder %s27, 1
      %p202 = por %p200, %p201
      %p204 = scmp.ne.s32.totalorder %s189, %s203
      %p205 = scmp.eq.s32.totalorder %s27, 0
      %p206 = por %p204, %p205
      %s208 = sadd.s32 %s207, 1
      %p211 = scmp.eq.s32.totalorder %s21, 1
      %p212 = scmp.ne.s32.totalorder %s207, %s209
      %p213 = scmp.eq.s32.totalorder %s21, 0
      %p214 = por %p212, %p213
      %p215 = scmp.ne.s32.totalorder %s207, %s209
      %p216 = scmp.eq.s32.totalorder %s26, 1
      %p217 = por %p215, %p216
      %p218 = scmp.ne.s32.totalorder %s209, %s210
      %p219 = scmp.eq.s32.totalorder %s26, 0
      %p220 = por %p218, %p219
      %p221 = scmp.ne.s32.totalorder %s209, %s210
      %p222 = scmp.eq.s32.totalorder %s27, 1
      %p223 = por %p221, %p222
      %p225 = scmp.ne.s32.totalorder %s210, %s224
      %p226 = scmp.eq.s32.totalorder %s27, 0
      %p227 = por %p225, %p226
      %s229 = sadd.s32 %s228, 1
      %p232 = scmp.eq.s32.totalorder %s21, 1
      %p233 = scmp.ne.s32.totalorder %s228, %s230
      %p234 = scmp.eq.s32.totalorder %s21, 0
      %p235 = por %p233, %p234
      %p236 = scmp.ne.s32.totalorder %s228, %s230
      %p237 = scmp.eq.s32.totalorder %s26, 1
      %p238 = por %p236, %p237
      %p239 = scmp.ne.s32.totalorder %s230, %s231
      %p240 = scmp.eq.s32.totalorder %s26, 0
      %p241 = por %p239, %p240
      %p242 = scmp.ne.s32.totalorder %s230, %s231
      %p243 = scmp.eq.s32.totalorder %s27, 1
      %p244 = por %p242, %p243
      %p246 = scmp.ne.s32.totalorder %s231, %s245
      %p247 = scmp.eq.s32.totalorder %s27, 0
      %p248 = por %p246, %p247
      %s250 = sadd.s32 %s249, 1
      %p253 = scmp.eq.s32.totalorder %s21, 1
      %p254 = scmp.ne.s32.totalorder %s249, %s251
      %p255 = scmp.eq.s32.totalorder %s21, 0
      %p256 = por %p254, %p255
      %p257 = scmp.ne.s32.totalorder %s249, %s251
      %p258 = scmp.eq.s32.totalorder %s26, 1
      %p259 = por %p257, %p258
      %p260 = scmp.ne.s32.totalorder %s251, %s252
      %p261 = scmp.eq.s32.totalorder %s26, 0
      %p262 = por %p260, %p261
      %p263 = scmp.ne.s32.totalorder %s251, %s252
      %p264 = scmp.eq.s32.totalorder %s27, 1
      %p265 = por %p263, %p264
      %p267 = scmp.ne.s32.totalorder %s252, %s266
      %p268 = scmp.eq.s32.totalorder %s27, 0
      %p269 = por %p267, %p268
      %s271 = sadd.s32 %s270, 1
      %p274 = scmp.eq.s32.totalorder %s21, 1
      %p275 = scmp.ne.s32.totalorder %s270, %s272
      %p276 = scmp.eq.s32.totalorder %s21, 0
      %p277 = por %p275, %p276
      %p278 = scmp.ne.s32.totalorder %s270, %s272
      %p279 = scmp.eq.s32.totalorder %s26, 1
      %p280 = por %p278, %p279
      %p281 = scmp.ne.s32.totalorder %s272, %s273
      %p282 = scmp.eq.s32.totalorder %s26, 0
      %p283 = por %p281, %p282
      %p284 = scmp.ne.s32.totalorder %s272, %s273
      %p285 = scmp.eq.s32.totalorder %s27, 1
      %p286 = por %p284, %p285
      %p288 = scmp.ne.s32.totalorder %s273, %s287
      %p289 = scmp.eq.s32.totalorder %s27, 0
      %p290 = por %p288, %p289
      %s291 = ssub.s32 %s21, %s28
      %p292 = scmp.eq.s32.totalorder %s291, 0
      %s294 = sadd.s32 %s293, 1
      %s295 = scalar_select %p292, %s293, %s294
      %p298 = pneg %p292
      %p299 = scmp.eq.s32.totalorder %s21, 1
      %p300 = por %p298, %p299
      %p301 = scmp.ne.s32.totalorder %s293, %s296
      %p302 = scmp.eq.s32.totalorder %s21, 0
      %p303 = por %p301, %p302
      %p304 = scmp.ne.s32.totalorder %s293, %s296
      %p305 = scmp.eq.s32.totalorder %s26, 1
      %p306 = por %p304, %p305
      %p307 = scmp.ne.s32.totalorder %s296, %s297
      %p308 = scmp.eq.s32.totalorder %s26, 0
      %p309 = por %p307, %p308
      %p310 = scmp.ne.s32.totalorder %s296, %s297
      %p311 = scmp.eq.s32.totalorder %s27, 1
      %p312 = por %p310, %p311
      %p314 = scmp.ne.s32.totalorder %s297, %s313
      %p315 = scmp.eq.s32.totalorder %s27, 0
      %p316 = por %p314, %p315
      %p317 = scmp.le.s32.totalorder 1, %s21
      %p318 = scmp.lt.s32.totalorder %s21, 3
      %p319 = pnand %p317, %p318
      %p320 = pneg %p319
      // Predicated region
      $region9: #{residual_block.1} parent=5 // pred_check
        _
      $region10: #{residual_block.1} parent=5 // pred_check_branch
        %322 = sbr.rel (%p319) target = $region12
      $region11: #{residual_block.1} parent=5 // pred_region
        %s323 = ssub.s32 %s21, 1
        // Predicated region
        $region13: #{residual_block.1} parent=11 // pred_check
          %p324 = pneg %p94
        $region14: #{residual_block.1} parent=11 // pred_check_branch
          %326 = sbr.rel (%p324) target = $region16
        $region15: #{residual_block.1} parent=11 // pred_region
          _
        $region16: #{residual_block.1} parent=11 // pred_fallthru
          _
        // Predicated region
        $region17: #{residual_block.1} parent=11 // pred_check
          %p327 = pneg %p115
        $region18: #{residual_block.1} parent=11 // pred_check_branch
          %329 = sbr.rel (%p327) target = $region20
        $region19: #{residual_block.1} parent=11 // pred_region
          _
        $region20: #{residual_block.1} parent=11 // pred_fallthru
          _
        // Predicated region
        $region21: #{residual_block.1} parent=11 // pred_check
          %p330 = pneg %p136
        $region22: #{residual_block.1} parent=11 // pred_check_branch
          %332 = sbr.rel (%p330) target = $region24
        $region23: #{residual_block.1} parent=11 // pred_region
          _
        $region24: #{residual_block.1} parent=11 // pred_fallthru
          _
        // Predicated region
        $region25: #{residual_block.1} parent=11 // pred_check
          %p333 = pneg %p157
        $region26: #{residual_block.1} parent=11 // pred_check_branch
          %335 = sbr.rel (%p333) target = $region28
        $region27: #{residual_block.1} parent=11 // pred_region
          _
        $region28: #{residual_block.1} parent=11 // pred_fallthru
          _
        // Predicated region
        $region29: #{residual_block.1} parent=11 // pred_check
          %p336 = pneg %p178
        $region30: #{residual_block.1} parent=11 // pred_check_branch
          %338 = sbr.rel (%p336) target = $region32
        $region31: #{residual_block.1} parent=11 // pred_region
          _
        $region32: #{residual_block.1} parent=11 // pred_fallthru
          _
        // Predicated region
        $region33: #{residual_block.1} parent=11 // pred_check
          %p339 = pneg %p199
        $region34: #{residual_block.1} parent=11 // pred_check_branch
          %341 = sbr.rel (%p339) target = $region36
        $region35: #{residual_block.1} parent=11 // pred_region
          _
        $region36: #{residual_block.1} parent=11 // pred_fallthru
          _
        // Predicated region
        $region37: #{residual_block.1} parent=11 // pred_check
          %p342 = pneg %p220
        $region38: #{residual_block.1} parent=11 // pred_check_branch
          %344 = sbr.rel (%p342) target = $region40
        $region39: #{residual_block.1} parent=11 // pred_region
          _
        $region40: #{residual_block.1} parent=11 // pred_fallthru
          _
        // Predicated region
        $region41: #{residual_block.1} parent=11 // pred_check
          %p345 = pneg %p241
        $region42: #{residual_block.1} parent=11 // pred_check_branch
          %347 = sbr.rel (%p345) target = $region44
        $region43: #{residual_block.1} parent=11 // pred_region
          _
        $region44: #{residual_block.1} parent=11 // pred_fallthru
          _
        // Predicated region
        $region45: #{residual_block.1} parent=11 // pred_check
          %p348 = pneg %p262
        $region46: #{residual_block.1} parent=11 // pred_check_branch
          %350 = sbr.rel (%p348) target = $region48
        $region47: #{residual_block.1} parent=11 // pred_region
          _
        $region48: #{residual_block.1} parent=11 // pred_fallthru
          _
        // Predicated region
        $region49: #{residual_block.1} parent=11 // pred_check
          %p351 = pneg %p283
        $region50: #{residual_block.1} parent=11 // pred_check_branch
          %353 = sbr.rel (%p351) target = $region52
        $region51: #{residual_block.1} parent=11 // pred_region
          _
        $region52: #{residual_block.1} parent=11 // pred_fallthru
          _
      $region12: #{residual_block.1} parent=5 // pred_fallthru
        _
      %p354 = scmp.lt.s32.totalorder %s21, 2
      // Predicated region
      $region53: #{residual_block.1} parent=5 // pred_check
        %p355 = pneg %p354
      $region54: #{residual_block.1} parent=5 // pred_check_branch
        %357 = sbr.rel (%p355) target = $region56
      $region55: #{residual_block.1} parent=5 // pred_region
        // Predicated region
        $region57: #{residual_block.1} parent=55 // pred_check
          %p358 = pneg %p41
        $region58: #{residual_block.1} parent=55 // pred_check_branch
          %360 = sbr.rel (%p358) target = $region60
        $region59: #{residual_block.1} parent=55 // pred_region
          %p361 = scmp.lt.s32.totalorder %s21, 1
          %s362 = scalar_select %p361, %s21, 1
          %s363 = smul.addr %s362, 2
          %s364 = smul.addr %s363, 8
          %s365 = scalar_lea.vmem %s0, %s364
        $region60: #{residual_block.1} parent=55 // pred_fallthru
          _
        // Predicated region
        $region61: #{residual_block.1} parent=55 // pred_check
          %p366 = pneg %p67
        $region62: #{residual_block.1} parent=55 // pred_check_branch
          %368 = sbr.rel (%p366) target = $region64
        $region63: #{residual_block.1} parent=55 // pred_region
          %p369 = scmp.lt.s32.totalorder %s21, 1
          %s370 = scalar_select %p369, %s21, 1
          %s371 = scalar_lea.vmem %s1, %s370
        $region64: #{residual_block.1} parent=55 // pred_fallthru
          _
      $region56: #{residual_block.1} parent=5 // pred_fallthru
        _
      %p372 = scmp.le.s32.totalorder 1, %s21
      %p373 = scmp.lt.s32.totalorder %s21, 3
      %p374 = pnand %p372, %p373
      %p375 = pneg %p374
      // Predicated region
      $region65: #{residual_block.1} parent=5 // pred_check
        _
      $region66: #{residual_block.1} parent=5 // pred_check_branch
        %377 = sbr.rel (%p374) target = $region68
      $region67: #{residual_block.1} parent=5 // pred_region
        %s378 = ssub.s32 %s21, 1
        %p379 = scmp.lt.s32.totalorder %s26, 1
        %s380 = scalar_select %p379, %s26, 1
        %s381 = smul.addr %s380, 2
        %s382 = smul.addr %s381, 8
        %s383 = scalar_lea.vmem %s0, %s382
        %p384 = pneg %p47
        %p385 = pneg %p44
        %p386 = scmp.lt.s32.totalorder %s26, 1
        %s387 = scalar_select %p386, %s26, 1
        %s388 = scalar_lea.vmem %s1, %s387
        %p389 = pneg %p73
        %p390 = pneg %p70
        %p391 = pneg %p94
        %p392 = pneg %p91
        %p393 = pneg %p115
        %p394 = pneg %p112
        %p395 = pneg %p136
        %p396 = pneg %p133
        %p397 = pneg %p157
        %p398 = pneg %p154
        %p399 = pneg %p178
        %p400 = pneg %p175
        %p401 = pneg %p199
        %p402 = pneg %p196
        %p403 = pneg %p220
        %p404 = pneg %p217
        %p405 = pneg %p241
        %p406 = pneg %p238
        %p407 = pneg %p262
        %p408 = pneg %p259
        %p409 = pneg %p283
        %p410 = pneg %p280
        %p411 = pneg %p309
        %p412 = pneg %p306
        %s413 = sand.u32 %s296, 1
        %s414 = scalar_lea.sflag [#allocation3], %s413
        %s415 = sand.u32 %s296, 1
        %s416 = smul.addr %s415, 16
        %s417 = scalar_lea.vmem [#allocation2], %s416
        %p418 = scmp.lt.s32.totalorder %s26, 1
        %s419 = scalar_select %p418, %s26, 1
        %s420 = smul.addr %s419, 2
        %s421 = smul.addr %s420, 8
        %s422 = scalar_lea.vmem %s0, %s421
        %p423 = scmp.lt.s32.totalorder %s26, 1
        %s424 = scalar_select %p423, %s26, 1
        %s425 = scalar_lea.vmem %s1, %s424
        %v427 = vld [vmem:[%s422] sm:$0xff]
        %v428 = vld [vmem:[%s422 + $0x8] sm:$0xff]
        %v429 = vlaneseq
        %v430 = vshrl.u32 %v429, 7
        %v431 = vadd.s32 %v430, 8
        %v432 = vadd.s32 %v430, 4294967295
        %v433 = vadd.s32 %v431, 4294967295
        %vm434 = vcmp.ge.s32.totalorder %v432, 0
        %vm435 = vcmp.ge.s32.totalorder %v433, 0
        %vm436 = vcmp.lt.s32.totalorder %v432, 16
        %vm437 = vcmp.lt.s32.totalorder %v433, 16
        %vm438 = vmand %vm434, %vm436
        %vm439 = vmand %vm435, %vm437
        %v440 = vsel %vm438, 1, 0
        %v441 = vsel %vm439, 1, 0
        %v442 = vcvt.s32.f32 %v440
        %v443 = vcvt.s32.f32 %v441
        %v444 = vadd.s32 %v430, 1
        %v445 = vadd.s32 %v431, 1
        %vm446 = vcmp.ge.s32.totalorder %v444, 0
        %vm447 = vcmp.ge.s32.totalorder %v445, 0
        %vm448 = vcmp.lt.s32.totalorder %v444, 16
        %vm449 = vcmp.lt.s32.totalorder %v445, 16
        %vm450 = vmand %vm446, %vm448
        %vm451 = vmand %vm447, %vm449
        %v452 = vsel %vm450, 1, 0
        %v453 = vsel %vm451, 1, 0
        %v454 = vcvt.s32.f32 %v452
        %v455 = vcvt.s32.f32 %v453
        %v456 = vpack.c.bf16 %v428, %v427
        %v457 = vld [vmem:[%s2] sm:$0xf]
        %vm458 = vcmask 64512
        %v460 = vsel %vm458, %v456, 0
        %vm462 = vcmask 1043456
        %v464 = vsel %vm462, %v457, 0
        %466 = vmatprep.subr.bf16.mxu0 0
        %467 = vmatpush1.bf16.msra.mxu0 0
        %468 = vmatprep.subr.bf16.mxu0 0
        %469 = vmatpush1.bf16.msra.mxu0 0
        %470 = vmatprep.subr.bf16.mxu0 0
        %471 = vmatpush1.bf16.msra.mxu0 0
        %472 = vmatprep.subr.bf16.mxu0 0
        %473 = vmatpush1.bf16.msra.mxu0 0
        %474 = vmatprep.subr.bf16.mxu0 0
        %475 = vmatpush1.bf16.msra.mxu0 0
        %476 = vmatprep.subr.bf16.mxu0 0
        %477 = vmatpush1.bf16.msra.mxu0 0
        %478 = vmatprep.subr.bf16.mxu0 0
        %479 = vmatpush1.bf16.msra.mxu0 0
        %480 = vmatprep.subr.bf16.mxu0 0
        %481 = vmatpush1.bf16.msra.mxu0 %v464
        %482 = vmatprep.subr.bf16.mxu0 0
        %483 = vmatpush2.bf16.msra.mxu0 0
        %484 = vmatprep.subr.bf16.mxu0 0
        %485 = vmatpush2.bf16.msra.mxu0 0
        %486 = vmatprep.subr.bf16.mxu0 0
        %487 = vmatpush2.bf16.msra.mxu0 0
        %488 = vmatprep.subr.bf16.mxu0 0
        %489 = vmatpush2.bf16.msra.mxu0 0
        %490 = vmatprep.subr.bf16.mxu0 0
        %491 = vmatpush2.bf16.msra.mxu0 0
        %492 = vmatprep.subr.bf16.mxu0 0
        %493 = vmatpush2.bf16.msra.mxu0 0
        %494 = vmatprep.subr.bf16.mxu0 0
        %495 = vmatpush2.bf16.msra.mxu0 0
        %496 = vmatprep.subr.bf16.mxu0 0
        %497 = vmatpush2.bf16.msra.mxu0 0
        %498 = vmatprep.mubr.bf16.mxu0 0
        %499 = vmatmul.mubr.bf16.gmra.mxu0 %v460
        %v500 = vpop.f32.mrf.mxu0
        %v501 = vadd.f32 0.0, %v500
        %v502 = vpop.f32.mrf.mxu0
        %v503 = vpop.f32.mrf.mxu0
        %v504 = vadd.f32 0.0, %v503
        %v505 = vpop.f32.mrf.mxu0
        %506 = vdwg.mxu0
        %v507 = vrot.slane %v501, 7
        %v508 = vrot.slane %v504, 7
        %vm509 = vcmp.lt.s32.totalorder %v430, 1
        %v510 = vsel %vm509, %v507, %v508
        %v511 = vsel %vm509, %v508, %v507
        %v512 = vmul.f32 %v511, %v442
        %v513 = vmul.f32 %v510, %v443
        %v514 = vadd.f32 %v512, 0.0
        %v515 = vadd.f32 %v513, 0.0
        %s516 = scalar_lea.vmem %s2, 4
        %v517 = vld [vmem:[%s516] sm:$0xf]
        %v519 = vsel %vm462, %v517, 0
        %521 = vmatprep.subr.bf16.mxu0 0
        %522 = vmatpush1.bf16.msra.mxu0 0
        %523 = vmatprep.subr.bf16.mxu0 0
        %524 = vmatpush1.bf16.msra.mxu0 0
        %525 = vmatprep.subr.bf16.mxu0 0
        %526 = vmatpush1.bf16.msra.mxu0 0
        %527 = vmatprep.subr.bf16.mxu0 0
        %528 = vmatpush1.bf16.msra.mxu0 0
        %529 = vmatprep.subr.bf16.mxu0 0
        %530 = vmatpush1.bf16.msra.mxu0 0
        %531 = vmatprep.subr.bf16.mxu0 0
        %532 = vmatpush1.bf16.msra.mxu0 0
        %533 = vmatprep.subr.bf16.mxu0 0
        %534 = vmatpush1.bf16.msra.mxu0 0
        %535 = vmatprep.subr.bf16.mxu0 0
        %536 = vmatpush1.bf16.msra.mxu0 %v519
        %537 = vmatprep.subr.bf16.mxu0 0
        %538 = vmatpush2.bf16.msra.mxu0 0
        %539 = vmatprep.subr.bf16.mxu0 0
        %540 = vmatpush2.bf16.msra.mxu0 0
        %541 = vmatprep.subr.bf16.mxu0 0
        %542 = vmatpush2.bf16.msra.mxu0 0
        %543 = vmatprep.subr.bf16.mxu0 0
        %544 = vmatpush2.bf16.msra.mxu0 0
        %545 = vmatprep.subr.bf16.mxu0 0
        %546 = vmatpush2.bf16.msra.mxu0 0
        %547 = vmatprep.subr.bf16.mxu0 0
        %548 = vmatpush2.bf16.msra.mxu0 0
        %549 = vmatprep.subr.bf16.mxu0 0
        %550 = vmatpush2.bf16.msra.mxu0 0
        %551 = vmatprep.subr.bf16.mxu0 0
        %552 = vmatpush2.bf16.msra.mxu0 0
        %553 = vmatprep.mubr.bf16.mxu0 0
        %554 = vmatmul.mubr.bf16.gmra.mxu0 %v460
        %v555 = vpop.f32.mrf.mxu0
        %v556 = vadd.f32 0.0, %v555
        %v557 = vpop.f32.mrf.mxu0
        %v558 = vpop.f32.mrf.mxu0
        %v559 = vadd.f32 0.0, %v558
        %v560 = vpop.f32.mrf.mxu0
        %561 = vdwg.mxu0
        %v562 = vadd.f32 %v514, %v556
        %v563 = vadd.f32 %v515, %v559
        %s564 = scalar_lea.vmem %s2, 8
        %v565 = vld [vmem:[%s564] sm:$0xf]
        %v567 = vsel %vm462, %v565, 0
        %569 = vmatprep.subr.bf16.mxu0 0
        %570 = vmatpush1.bf16.msra.mxu0 0
        %571 = vmatprep.subr.bf16.mxu0 0
        %572 = vmatpush1.bf16.msra.mxu0 0
        %573 = vmatprep.subr.bf16.mxu0 0
        %574 = vmatpush1.bf16.msra.mxu0 0
        %575 = vmatprep.subr.bf16.mxu0 0
        %576 = vmatpush1.bf16.msra.mxu0 0
        %577 = vmatprep.subr.bf16.mxu0 0
        %578 = vmatpush1.bf16.msra.mxu0 0
        %579 = vmatprep.subr.bf16.mxu0 0
        %580 = vmatpush1.bf16.msra.mxu0 0
        %581 = vmatprep.subr.bf16.mxu0 0
        %582 = vmatpush1.bf16.msra.mxu0 0
        %583 = vmatprep.subr.bf16.mxu0 0
        %584 = vmatpush1.bf16.msra.mxu0 %v567
        %585 = vmatprep.subr.bf16.mxu0 0
        %586 = vmatpush2.bf16.msra.mxu0 0
        %587 = vmatprep.subr.bf16.mxu0 0
        %588 = vmatpush2.bf16.msra.mxu0 0
        %589 = vmatprep.subr.bf16.mxu0 0
        %590 = vmatpush2.bf16.msra.mxu0 0
        %591 = vmatprep.subr.bf16.mxu0 0
        %592 = vmatpush2.bf16.msra.mxu0 0
        %593 = vmatprep.subr.bf16.mxu0 0
        %594 = vmatpush2.bf16.msra.mxu0 0
        %595 = vmatprep.subr.bf16.mxu0 0
        %596 = vmatpush2.bf16.msra.mxu0 0
        %597 = vmatprep.subr.bf16.mxu0 0
        %598 = vmatpush2.bf16.msra.mxu0 0
        %599 = vmatprep.subr.bf16.mxu0 0
        %600 = vmatpush2.bf16.msra.mxu0 0
        %601 = vmatprep.mubr.bf16.mxu0 0
        %602 = vmatmul.mubr.bf16.gmra.mxu0 %v460
        %v603 = vpop.f32.mrf.mxu0
        %v604 = vadd.f32 0.0, %v603
        %v605 = vpop.f32.mrf.mxu0
        %v606 = vpop.f32.mrf.mxu0
        %v607 = vadd.f32 0.0, %v606
        %v608 = vpop.f32.mrf.mxu0
        %609 = vdwg.mxu0
        %v610 = vrot.slane %v604, 1
        %v611 = vrot.slane %v607, 1
        %vm612 = vcmp.lt.s32.totalorder %v430, 7
        %v613 = vsel %vm612, %v610, %v611
        %v614 = vsel %vm612, %v611, %v610
        %v615 = vmul.f32 %v613, %v454
        %v616 = vmul.f32 %v614, %v455
        %v617 = vadd.f32 %v562, %v615
        %v618 = vadd.f32 %v563, %v616
        %v619 = vld [vmem:[%s3] sm:$0x1]
        %v621 = vlaneseq
        %v622 = vshrl.u32 %v621, 7
        %v623 = vsub.s32 0, %v622
        %v624 = vrot.slane %v619, %v623
        %v626 = vadd.f32 %v617, %v624
        %v627 = vadd.f32 %v618, %v624
        %628 = vadd.xlane.f32.xlu0 %v626
        %v629 = vpop.xlane.xlu0 %628
        %630 = vadd.xlane.f32.xlu0 %v627
        %v631 = vpop.xlane.xlu0 %630
        %v632 = vmul.f32 %v626, %v626
        %v633 = vmul.f32 %v627, %v627
        %634 = vadd.xlane.f32.xlu0 %v632
        %v635 = vpop.xlane.xlu0 %634
        %636 = vadd.xlane.f32.xlu0 %v633
        %v637 = vpop.xlane.xlu0 %636
        %v638 = vmul.f32 %v629, 0.03125
        %v639 = vmul.f32 %v631, 0.03125
        %v640 = vmul.f32 %v635, 0.03125
        %v641 = vmul.f32 %v637, 0.03125
        %v642 = vmul.f32 %v638, %v638
        %v643 = vmul.f32 %v639, %v639
        %v644 = vsub.f32 %v640, %v642
        %v645 = vsub.f32 %v641, %v643
        %v646 = vsub.f32 %v626, %v638
        %v647 = vsub.f32 %v627, %v639
        %v648 = vadd.f32 %v644, 1e-05
        %v649 = vadd.f32 %v645, 1e-05
        %v650 = vrsqrt.pop %v648
        %v651 = vrsqrt.pop %v649
        %v652 = vmul.f32 %v646, %v650
        %v653 = vmul.f32 %v647, %v651
        %v654 = vld [vmem:[%s4] sm:$0x1]
        %v656 = vlaneseq
        %v657 = vshrl.u32 %v656, 7
        %v658 = vsub.s32 0, %v657
        %v659 = vrot.slane %v654, %v658
        %v661 = vmul.f32 %v652, %v659
        %v662 = vmul.f32 %v653, %v659
        %v663 = vld [vmem:[%s5] sm:$0x1]
        %v665 = vlaneseq
        %v666 = vshrl.u32 %v665, 7
        %v667 = vsub.s32 0, %v666
        %v668 = vrot.slane %v663, %v667
        %v670 = vadd.f32 %v661, %v668
        %v671 = vadd.f32 %v662, %v668
        %v672 = vmin.f32 %v670, 20.0
        %v673 = vmin.f32 %v671, 20.0
        %v674 = vmul.f32 %v672, 1.442695
        %v675 = vpow.pop %v674
        %v676 = vmul.f32 %v673, 1.442695
        %v677 = vpow.pop %v676
        %v678 = vadd.f32 %v675, 1.0
        %v679 = vadd.f32 %v677, 1.0
        %v680 = vmul.f32 %v678, %v678
        %v681 = vmul.f32 %v679, %v679
        %v682 = vsub.f32 %v680, 1.0
        %v683 = vsub.f32 %v681, 1.0
        %v684 = vmul.f32 %v670, %v682
        %v685 = vmul.f32 %v671, %v683
        %v686 = vadd.f32 %v680, 1.0
        %v687 = vadd.f32 %v681, 1.0
        %v688 = vrcp.pop %v686
        %v689 = vrcp.pop %v687
        %v690 = vmul.f32 %v684, %v688
        %v691 = vmul.f32 %v685, %v689
        %v692 = vld [vmem:[%s425] sm:$0x1]
        %v694 = vlaneseq
        %v695 = vshrl.u32 %v694, 7
        %v696 = vsub.s32 0, %v695
        %v697 = vrot.slane %v692, %v696
        %v699 = vadd.f32 %v690, %v697
        %v700 = vadd.f32 %v691, %v697
        %v701 = vpack.c.bf16 %v700, %v699
        %v702 = vld [vmem:[%s6] sm:$0xf]
        %v703 = vld [vmem:[%s6 + $0x4] sm:$0xf]
        %v704 = vld [vmem:[%s6 + $0x8] sm:$0xf]
        %v705 = vld [vmem:[%s6 + $0xc] sm:$0xf]
        %v706 = vld [vmem:[%s6 + $0x10] sm:$0xf]
        %v707 = vld [vmem:[%s6 + $0x14] sm:$0xf]
        %v708 = vld [vmem:[%s6 + $0x18] sm:$0xf]
        %v709 = vld [vmem:[%s6 + $0x1c] sm:$0xf]
        %v710 = vld [vmem:[%s6 + $0x20] sm:$0xf]
        %v711 = vld [vmem:[%s6 + $0x24] sm:$0xf]
        %v712 = vld [vmem:[%s6 + $0x28] sm:$0xf]
        %v713 = vld [vmem:[%s6 + $0x2c] sm:$0xf]
        %v714 = vld [vmem:[%s6 + $0x30] sm:$0xf]
        %v715 = vld [vmem:[%s6 + $0x34] sm:$0xf]
        %v716 = vld [vmem:[%s6 + $0x38] sm:$0xf]
        %v717 = vld [vmem:[%s6 + $0x3c] sm:$0xf]
        %v734 = vunpack.c.l.b16 %v702
        %v735 = vunpack.c.l.b16 %v703
        %v736 = vunpack.c.l.b16 %v704
        %v737 = vunpack.c.l.b16 %v705
        %v738 = vunpack.c.l.b16 %v706
        %v739 = vunpack.c.l.b16 %v707
        %v740 = vunpack.c.l.b16 %v708
        %v741 = vunpack.c.l.b16 %v709
        %v742 = vunpack.c.l.b16 %v710
        %v743 = vunpack.c.l.b16 %v711
        %v744 = vunpack.c.l.b16 %v712
        %v745 = vunpack.c.l.b16 %v713
        %v746 = vunpack.c.l.b16 %v714
        %v747 = vunpack.c.l.b16 %v715
        %v748 = vunpack.c.l.b16 %v716
        %v749 = vunpack.c.l.b16 %v717
        %v750 = vpack.c.b16 %v735, %v734
        %v751 = vpack.c.b16 %v737, %v736
        %v752 = vpack.c.b16 %v739, %v738
        %v753 = vpack.c.b16 %v741, %v740
        %v754 = vpack.c.b16 %v743, %v742
        %v755 = vpack.c.b16 %v745, %v744
        %v756 = vpack.c.b16 %v747, %v746
        %v757 = vpack.c.b16 %v749, %v748
        %766 = vmatprep.subr.bf16.mxu0 0
        %767 = vmatpush1.bf16.msra.mxu0 %v757
        %768 = vmatprep.subr.bf16.mxu0 0
        %769 = vmatpush1.bf16.msra.mxu0 %v756
        %770 = vmatprep.subr.bf16.mxu0 0
        %771 = vmatpush1.bf16.msra.mxu0 %v755
        %772 = vmatprep.subr.bf16.mxu0 0
        %773 = vmatpush1.bf16.msra.mxu0 %v754
        %774 = vmatprep.subr.bf16.mxu0 0
        %775 = vmatpush1.bf16.msra.mxu0 %v753
        %776 = vmatprep.subr.bf16.mxu0 0
        %777 = vmatpush1.bf16.msra.mxu0 %v752
        %778 = vmatprep.subr.bf16.mxu0 0
        %779 = vmatpush1.bf16.msra.mxu0 %v751
        %780 = vmatprep.subr.bf16.mxu0 0
        %781 = vmatpush1.bf16.msra.mxu0 %v750
        %782 = vmatprep.subr.bf16.mxu0 0
        %783 = vmatpush2.bf16.msra.mxu0 0
        %784 = vmatprep.subr.bf16.mxu0 0
        %785 = vmatpush2.bf16.msra.mxu0 0
        %786 = vmatprep.subr.bf16.mxu0 0
        %787 = vmatpush2.bf16.msra.mxu0 0
        %788 = vmatprep.subr.bf16.mxu0 0
        %789 = vmatpush2.bf16.msra.mxu0 0
        %790 = vmatprep.subr.bf16.mxu0 0
        %791 = vmatpush2.bf16.msra.mxu0 0
        %792 = vmatprep.subr.bf16.mxu0 0
        %793 = vmatpush2.bf16.msra.mxu0 0
        %794 = vmatprep.subr.bf16.mxu0 0
        %795 = vmatpush2.bf16.msra.mxu0 0
        %796 = vmatprep.subr.bf16.mxu0 0
        %797 = vmatpush2.bf16.msra.mxu0 0
        %798 = vmatprep.mubr.bf16.mxu0 0
        %799 = vmatmul.mubr.bf16.gmra.mxu0 %v701
        %v800 = vpop.f32.mrf.mxu0
        %v801 = vadd.f32 0.0, %v800
        %v802 = vpop.f32.mrf.mxu0
        %v803 = vpop.f32.mrf.mxu0
        %v804 = vadd.f32 0.0, %v803
        %v805 = vpop.f32.mrf.mxu0
        %806 = vdwg.mxu0
        %v807 = vrot.slane %v801, 7
        %v808 = vrot.slane %v804, 7
        %v809 = vsel %vm509, %v807, %v808
        %v810 = vsel %vm509, %v808, %v807
        %v811 = vmul.f32 %v810, %v442
        %v812 = vmul.f32 %v809, %v443
        %v813 = vadd.f32 %v811, 0.0
        %v814 = vadd.f32 %v812, 0.0
        %s815 = scalar_lea.vmem %s6, 64
        %v816 = vld [vmem:[%s815] sm:$0xf]
        %v817 = vld [vmem:[%s815 + $0x4] sm:$0xf]
        %v818 = vld [vmem:[%s815 + $0x8] sm:$0xf]
        %v819 = vld [vmem:[%s815 + $0xc] sm:$0xf]
        %v820 = vld [vmem:[%s815 + $0x10] sm:$0xf]
        %v821 = vld [vmem:[%s815 + $0x14] sm:$0xf]
        %v822 = vld [vmem:[%s815 + $0x18] sm:$0xf]
        %v823 = vld [vmem:[%s815 + $0x1c] sm:$0xf]
        %v824 = vld [vmem:[%s815 + $0x20] sm:$0xf]
        %v825 = vld [vmem:[%s815 + $0x24] sm:$0xf]
        %v826 = vld [vmem:[%s815 + $0x28] sm:$0xf]
        %v827 = vld [vmem:[%s815 + $0x2c] sm:$0xf]
        %v828 = vld [vmem:[%s815 + $0x30] sm:$0xf]
        %v829 = vld [vmem:[%s815 + $0x34] sm:$0xf]
        %v830 = vld [vmem:[%s815 + $0x38] sm:$0xf]
        %v831 = vld [vmem:[%s815 + $0x3c] sm:$0xf]
        %v848 = vunpack.c.l.b16 %v816
        %v849 = vunpack.c.l.b16 %v817
        %v850 = vunpack.c.l.b16 %v818
        %v851 = vunpack.c.l.b16 %v819
        %v852 = vunpack.c.l.b16 %v820
        %v853 = vunpack.c.l.b16 %v821
        %v854 = vunpack.c.l.b16 %v822
        %v855 = vunpack.c.l.b16 %v823
        %v856 = vunpack.c.l.b16 %v824
        %v857 = vunpack.c.l.b16 %v825
        %v858 = vunpack.c.l.b16 %v826
        %v859 = vunpack.c.l.b16 %v827
        %v860 = vunpack.c.l.b16 %v828
        %v861 = vunpack.c.l.b16 %v829
        %v862 = vunpack.c.l.b16 %v830
        %v863 = vunpack.c.l.b16 %v831
        %v864 = vpack.c.b16 %v849, %v848
        %v865 = vpack.c.b16 %v851, %v850
        %v866 = vpack.c.b16 %v853, %v852
        %v867 = vpack.c.b16 %v855, %v854
        %v868 = vpack.c.b16 %v857, %v856
        %v869 = vpack.c.b16 %v859, %v858
        %v870 = vpack.c.b16 %v861, %v860
        %v871 = vpack.c.b16 %v863, %v862
        %880 = vmatprep.subr.bf16.mxu0 0
        %881 = vmatpush1.bf16.msra.mxu0 %v871
        %882 = vmatprep.subr.bf16.mxu0 0
        %883 = vmatpush1.bf16.msra.mxu0 %v870
        %884 = vmatprep.subr.bf16.mxu0 0
        %885 = vmatpush1.bf16.msra.mxu0 %v869
        %886 = vmatprep.subr.bf16.mxu0 0
        %887 = vmatpush1.bf16.msra.mxu0 %v868
        %888 = vmatprep.subr.bf16.mxu0 0
        %889 = vmatpush1.bf16.msra.mxu0 %v867
        %890 = vmatprep.subr.bf16.mxu0 0
        %891 = vmatpush1.bf16.msra.mxu0 %v866
        %892 = vmatprep.subr.bf16.mxu0 0
        %893 = vmatpush1.bf16.msra.mxu0 %v865
        %894 = vmatprep.subr.bf16.mxu0 0
        %895 = vmatpush1.bf16.msra.mxu0 %v864
        %896 = vmatprep.subr.bf16.mxu0 0
        %897 = vmatpush2.bf16.msra.mxu0 0
        %898 = vmatprep.subr.bf16.mxu0 0
        %899 = vmatpush2.bf16.msra.mxu0 0
        %900 = vmatprep.subr.bf16.mxu0 0
        %901 = vmatpush2.bf16.msra.mxu0 0
        %902 = vmatprep.subr.bf16.mxu0 0
        %903 = vmatpush2.bf16.msra.mxu0 0
        %904 = vmatprep.subr.bf16.mxu0 0
        %905 = vmatpush2.bf16.msra.mxu0 0
        %906 = vmatprep.subr.bf16.mxu0 0
        %907 = vmatpush2.bf16.msra.mxu0 0
        %908 = vmatprep.subr.bf16.mxu0 0
        %909 = vmatpush2.bf16.msra.mxu0 0
        %910 = vmatprep.subr.bf16.mxu0 0
        %911 = vmatpush2.bf16.msra.mxu0 0
        %912 = vmatprep.mubr.bf16.mxu0 0
        %913 = vmatmul.mubr.bf16.gmra.mxu0 %v701
        %v914 = vpop.f32.mrf.mxu0
        %v915 = vadd.f32 0.0, %v914
        %v916 = vpop.f32.mrf.mxu0
        %v917 = vpop.f32.mrf.mxu0
        %v918 = vadd.f32 0.0, %v917
        %v919 = vpop.f32.mrf.mxu0
        %920 = vdwg.mxu0
        %v921 = vadd.f32 %v813, %v915
        %v922 = vadd.f32 %v814, %v918
        %s923 = scalar_lea.vmem %s6, 128
        %v924 = vld [vmem:[%s923] sm:$0xf]
        %v925 = vld [vmem:[%s923 + $0x4] sm:$0xf]
        %v926 = vld [vmem:[%s923 + $0x8] sm:$0xf]
        %v927 = vld [vmem:[%s923 + $0xc] sm:$0xf]
        %v928 = vld [vmem:[%s923 + $0x10] sm:$0xf]
        %v929 = vld [vmem:[%s923 + $0x14] sm:$0xf]
        %v930 = vld [vmem:[%s923 + $0x18] sm:$0xf]
        %v931 = vld [vmem:[%s923 + $0x1c] sm:$0xf]
        %v932 = vld [vmem:[%s923 + $0x20] sm:$0xf]
        %v933 = vld [vmem:[%s923 + $0x24] sm:$0xf]
        %v934 = vld [vmem:[%s923 + $0x28] sm:$0xf]
        %v935 = vld [vmem:[%s923 + $0x2c] sm:$0xf]
        %v936 = vld [vmem:[%s923 + $0x30] sm:$0xf]
        %v937 = vld [vmem:[%s923 + $0x34] sm:$0xf]
        %v938 = vld [vmem:[%s923 + $0x38] sm:$0xf]
        %v939 = vld [vmem:[%s923 + $0x3c] sm:$0xf]
        %v956 = vunpack.c.l.b16 %v924
        %v957 = vunpack.c.l.b16 %v925
        %v958 = vunpack.c.l.b16 %v926
        %v959 = vunpack.c.l.b16 %v927
        %v960 = vunpack.c.l.b16 %v928
        %v961 = vunpack.c.l.b16 %v929
        %v962 = vunpack.c.l.b16 %v930
        %v963 = vunpack.c.l.b16 %v931
        %v964 = vunpack.c.l.b16 %v932
        %v965 = vunpack.c.l.b16 %v933
        %v966 = vunpack.c.l.b16 %v934
        %v967 = vunpack.c.l.b16 %v935
        %v968 = vunpack.c.l.b16 %v936
        %v969 = vunpack.c.l.b16 %v937
        %v970 = vunpack.c.l.b16 %v938
        %v971 = vunpack.c.l.b16 %v939
        %v972 = vpack.c.b16 %v957, %v956
        %v973 = vpack.c.b16 %v959, %v958
        %v974 = vpack.c.b16 %v961, %v960
        %v975 = vpack.c.b16 %v963, %v962
        %v976 = vpack.c.b16 %v965, %v964
        %v977 = vpack.c.b16 %v967, %v966
        %v978 = vpack.c.b16 %v969, %v968
        %v979 = vpack.c.b16 %v971, %v970
        %988 = vmatprep.subr.bf16.mxu0 0
        %989 = vmatpush1.bf16.msra.mxu0 %v979
        %990 = vmatprep.subr.bf16.mxu0 0
        %991 = vmatpush1.bf16.msra.mxu0 %v978
        %992 = vmatprep.subr.bf16.mxu0 0
        %993 = vmatpush1.bf16.msra.mxu0 %v977
        %994 = vmatprep.subr.bf16.mxu0 0
        %995 = vmatpush1.bf16.msra.mxu0 %v976
        %996 = vmatprep.subr.bf16.mxu0 0
        %997 = vmatpush1.bf16.msra.mxu0 %v975
        %998 = vmatprep.subr.bf16.mxu0 0
        %999 = vmatpush1.bf16.msra.mxu0 %v974
        %1000 = vmatprep.subr.bf16.mxu0 0
        %1001 = vmatpush1.bf16.msra.mxu0 %v973
        %1002 = vmatprep.subr.bf16.mxu0 0
        %1003 = vmatpush1.bf16.msra.mxu0 %v972
        %1004 = vmatprep.subr.bf16.mxu0 0
        %1005 = vmatpush2.bf16.msra.mxu0 0
        %1006 = vmatprep.subr.bf16.mxu0 0
        %1007 = vmatpush2.bf16.msra.mxu0 0
        %1008 = vmatprep.subr.bf16.mxu0 0
        %1009 = vmatpush2.bf16.msra.mxu0 0
        %1010 = vmatprep.subr.bf16.mxu0 0
        %1011 = vmatpush2.bf16.msra.mxu0 0
        %1012 = vmatprep.subr.bf16.mxu0 0
        %1013 = vmatpush2.bf16.msra.mxu0 0
        %1014 = vmatprep.subr.bf16.mxu0 0
        %1015 = vmatpush2.bf16.msra.mxu0 0
        %1016 = vmatprep.subr.bf16.mxu0 0
        %1017 = vmatpush2.bf16.msra.mxu0 0
        %1018 = vmatprep.subr.bf16.mxu0 0
        %1019 = vmatpush2.bf16.msra.mxu0 0
        %1020 = vmatprep.mubr.bf16.mxu0 0
        %1021 = vmatmul.mubr.bf16.gmra.mxu0 %v701
        %v1022 = vpop.f32.mrf.mxu0
        %v1023 = vadd.f32 0.0, %v1022
        %v1024 = vpop.f32.mrf.mxu0
        %v1025 = vpop.f32.mrf.mxu0
        %v1026 = vadd.f32 0.0, %v1025
        %v1027 = vpop.f32.mrf.mxu0
        %1028 = vdwg.mxu0
        %v1029 = vrot.slane %v1023, 1
        %v1030 = vrot.slane %v1026, 1
        %v1031 = vsel %vm612, %v1029, %v1030
        %v1032 = vsel %vm612, %v1030, %v1029
        %v1033 = vmul.f32 %v1031, %v454
        %v1034 = vmul.f32 %v1032, %v455
        %v1035 = vadd.f32 %v921, %v1033
        %v1036 = vadd.f32 %v922, %v1034
        %v1037 = vld [vmem:[%s7] sm:$0x1]
        %v1039 = vlaneseq
        %v1040 = vshrl.u32 %v1039, 7
        %v1041 = vsub.s32 0, %v1040
        %v1042 = vrot.slane %v1037, %v1041
        %v1044 = vadd.f32 %v1035, %v1042
        %v1045 = vadd.f32 %v1036, %v1042
        %1046 = vadd.xlane.f32.xlu0 %v1044
        %v1047 = vpop.xlane.xlu0 %1046
        %1048 = vadd.xlane.f32.xlu0 %v1045
        %v1049 = vpop.xlane.xlu0 %1048
        %v1050 = vmul.f32 %v1044, %v1044
        %v1051 = vmul.f32 %v1045, %v1045
        %1052 = vadd.xlane.f32.xlu0 %v1050
        %v1053 = vpop.xlane.xlu0 %1052
        %1054 = vadd.xlane.f32.xlu0 %v1051
        %v1055 = vpop.xlane.xlu0 %1054
        %v1056 = vmul.f32 %v1047, 0.03125
        %v1057 = vmul.f32 %v1049, 0.03125
        %v1058 = vmul.f32 %v1053, 0.03125
        %v1059 = vmul.f32 %v1055, 0.03125
        %v1060 = vmul.f32 %v1056, %v1056
        %v1061 = vmul.f32 %v1057, %v1057
        %v1062 = vsub.f32 %v1058, %v1060
        %v1063 = vsub.f32 %v1059, %v1061
        %v1064 = vsub.f32 %v1044, %v1056
        %v1065 = vsub.f32 %v1045, %v1057
        %v1066 = vadd.f32 %v1062, 1e-05
        %v1067 = vadd.f32 %v1063, 1e-05
        %v1068 = vrsqrt.pop %v1066
        %v1069 = vrsqrt.pop %v1067
        %v1070 = vmul.f32 %v1064, %v1068
        %v1071 = vmul.f32 %v1065, %v1069
        %v1072 = vld [vmem:[%s8] sm:$0x1]
        %v1074 = vlaneseq
        %v1075 = vshrl.u32 %v1074, 7
        %v1076 = vsub.s32 0, %v1075
        %v1077 = vrot.slane %v1072, %v1076
        %v1079 = vmul.f32 %v1070, %v1077
        %v1080 = vmul.f32 %v1071, %v1077
        %v1081 = vld [vmem:[%s9] sm:$0x1]
        %v1083 = vlaneseq
        %v1084 = vshrl.u32 %v1083, 7
        %v1085 = vsub.s32 0, %v1084
        %v1086 = vrot.slane %v1081, %v1085
        %v1088 = vadd.f32 %v1079, %v1086
        %v1089 = vadd.f32 %v1080, %v1086
        %v1090 = vmin.f32 %v1088, 20.0
        %v1091 = vmin.f32 %v1089, 20.0
        %v1092 = vmul.f32 %v1090, 1.442695
        %v1093 = vpow.pop %v1092
        %v1094 = vmul.f32 %v1091, 1.442695
        %v1095 = vpow.pop %v1094
        %v1096 = vadd.f32 %v1093, 1.0
        %v1097 = vadd.f32 %v1095, 1.0
        %v1098 = vmul.f32 %v1096, %v1096
        %v1099 = vmul.f32 %v1097, %v1097
        %v1100 = vsub.f32 %v1098, 1.0
        %v1101 = vsub.f32 %v1099, 1.0
        %v1102 = vmul.f32 %v1088, %v1100
        %v1103 = vmul.f32 %v1089, %v1101
        %v1104 = vadd.f32 %v1098, 1.0
        %v1105 = vadd.f32 %v1099, 1.0
        %v1106 = vrcp.pop %v1104
        %v1107 = vrcp.pop %v1105
        %v1108 = vmul.f32 %v1102, %v1106
        %v1109 = vmul.f32 %v1103, %v1107
        %v1110 = vld [vmem:[%s10] sm:$0xf]
        %v1111 = vld [vmem:[%s11] sm:$0x1]
        %v1113 = vlaneseq
        %v1114 = vshrl.u32 %v1113, 7
        %v1115 = vsub.s32 0, %v1114
        %v1116 = vrot.slane %v1111, %v1115
        %v1119 = vsel %vm462, %v1110, 0
        %1121 = vmatprep.subr.bf16.mxu0 0
        %1122 = vmatpush1.bf16.msra.mxu0 0
        %1123 = vmatprep.subr.bf16.mxu0 0
        %1124 = vmatpush1.bf16.msra.mxu0 0
        %1125 = vmatprep.subr.bf16.mxu0 0
        %1126 = vmatpush1.bf16.msra.mxu0 0
        %1127 = vmatprep.subr.bf16.mxu0 0
        %1128 = vmatpush1.bf16.msra.mxu0 0
        %1129 = vmatprep.subr.bf16.mxu0 0
        %1130 = vmatpush1.bf16.msra.mxu0 0
        %1131 = vmatprep.subr.bf16.mxu0 0
        %1132 = vmatpush1.bf16.msra.mxu0 0
        %1133 = vmatprep.subr.bf16.mxu0 0
        %1134 = vmatpush1.bf16.msra.mxu0 0
        %1135 = vmatprep.subr.bf16.mxu0 0
        %1136 = vmatpush1.bf16.msra.mxu0 %v1119
        %1137 = vmatprep.subr.bf16.mxu0 0
        %1138 = vmatpush2.bf16.msra.mxu0 0
        %1139 = vmatprep.subr.bf16.mxu0 0
        %1140 = vmatpush2.bf16.msra.mxu0 0
        %1141 = vmatprep.subr.bf16.mxu0 0
        %1142 = vmatpush2.bf16.msra.mxu0 0
        %1143 = vmatprep.subr.bf16.mxu0 0
        %1144 = vmatpush2.bf16.msra.mxu0 0
        %1145 = vmatprep.subr.bf16.mxu0 0
        %1146 = vmatpush2.bf16.msra.mxu0 0
        %1147 = vmatprep.subr.bf16.mxu0 0
        %1148 = vmatpush2.bf16.msra.mxu0 0
        %1149 = vmatprep.subr.bf16.mxu0 0
        %1150 = vmatpush2.bf16.msra.mxu0 0
        %1151 = vmatprep.subr.bf16.mxu0 0
        %1152 = vmatpush2.bf16.msra.mxu0 0
        %1153 = vmatprep.mubr.bf16.mxu0 0
        %1154 = vmatmul.mubr.bf16.gmra.mxu0 %v460
        %v1155 = vpop.f32.mrf.mxu0
        %v1156 = vadd.f32 %v1116, %v1155
        %v1157 = vpop.f32.mrf.mxu0
        %v1158 = vpop.f32.mrf.mxu0
        %v1159 = vadd.f32 %v1116, %v1158
        %v1160 = vpop.f32.mrf.mxu0
        %1161 = vdwg.mxu0
        %v1162 = vadd.f32 %v1108, %v1156
        %v1163 = vadd.f32 %v1109, %v1159
        %1164 = vst [vmem:[%s417] sm:$0xff] %v1162
        %1165 = vst [vmem:[%s417 + $0x8] sm:$0xff] %v1163
        %s1166 = sand.u32 %s296, 1
        %s1167 = scalar_lea.sflag [#allocation3], %s1166
        %s1168 = sand.u32 %s296, 1
        %s1169 = smul.addr %s1168, 16
        %s1170 = scalar_lea.vmem [#allocation2], %s1169
        // Predicated region
        $region69: #{residual_block.1} parent=67 // pred_check
          %p1171 = pneg %p306
        $region70: #{residual_block.1} parent=67 // pred_check_branch
          %1173 = sbr.rel (%p1171) target = $region72
        $region71: #{residual_block.1} parent=67 // pred_region
          %s1175 = ssub.s32 256, 256
          %1176 = vsyncadd %s1167, %s1175
          %s1177 = smul.addr %s26, 2
          %s1178 = smul.addr %s1177, 128
          %s1179 = scalar_lea.hbm %s12, %s1178
          %s1180 = sshll.u32 %s1170, 4
          %s1181 = int_to_ptr.vmem [resolvable:$true] %s1180
          %1186 = dma.vmem_to_hbm [thread:$0]  %s1181, 256, %s1179, %s1167, 128, 128, 8
        $region72: #{residual_block.1} parent=67 // pred_fallthru
          _
      $region68: #{residual_block.1} parent=5 // pred_fallthru
        _
      %p1187 = scmp.le.s32.totalorder 2, %s21
      // Predicated region
      $region73: #{residual_block.1} parent=5 // pred_check
        %p1188 = pneg %p1187
      $region74: #{residual_block.1} parent=5 // pred_check_branch
        %1190 = sbr.rel (%p1188) target = $region76
      $region75: #{residual_block.1} parent=5 // pred_region
        %s1191 = ssub.s32 %s21, 2
        // Predicated region
        $region77: #{residual_block.1} parent=75 // pred_check
          %p1192 = pneg %p312
        $region78: #{residual_block.1} parent=75 // pred_check_branch
          %1194 = sbr.rel (%p1192) target = $region80
        $region79: #{residual_block.1} parent=75 // pred_region
          %s1195 = sand.u32 %s297, 1
          %s1196 = scalar_lea.sflag [#allocation3], %s1195
          %s1197 = sand.u32 %s297, 1
          %s1198 = smul.addr %s1197, 16
          %s1199 = scalar_lea.vmem [#allocation2], %s1198
          %1200 = dma.done %s1196, 256
        $region80: #{residual_block.1} parent=75 // pred_fallthru
          _
      $region76: #{residual_block.1} parent=5 // pred_fallthru
        _
    $region6: #{residual_block.1} parent=1 // loop_footer
      %s25 = sadd.s32 1, %s21
    $region7: #{residual_block.1} parent=1 // loop_footer_branch
      %20 = sbr.rel target = $region3
    $region8: #{residual_block.1} parent=1 // loop_exit
      _
    %1201 = vsyncpa [#allocation3], 1
    %s1202 = scalar_lea.sflag [#allocation3], 1
    %1203 = vsyncpa %s1202, 1

</llo_original>
